<compile_context>
chip_gen: v5e
topology: v5e:2x2
jax: 0.10.0
libtpu: 0.0.40
codegen_flags: <defaults>
</compile_context>

<pallas_src>
import functools

import jax
import jax.numpy as jnp
import numpy as np
from jax.experimental import pallas as pl
from jax.experimental.pallas import tpu as pltpu


def _round_up(x, m):
    return (x + m - 1) // m * m


# ----------------------------- Pallas kernel ------------------------------- #
def _cplinear_kernel(x_ref, wf_ref, e_ref, tbl_ref, q_ref, k_ref, v_ref, *,
                     num_heads, head_dim, rank_q, rank_kv,
                     bq_off, bk_off, bv_off, a_off, a_pad_w):
    nhhd = num_heads * head_dim
    half = head_dim // 2

    # One fused wide projection (MXU): bf16 in, f32 accumulate.
    x = x_ref[...].astype(wf_ref.dtype)                                   # (tm, H)
    p = jnp.dot(x, wf_ref[...], preferred_element_type=jnp.float32)      # (tm, OUT)

    # Expand A[m, h, r] across the head_dim lanes of head h with a small one-hot
    # matmul, giving lane-aligned coefficients for every rank.
    a = p[:, a_off:a_off + a_pad_w].astype(e_ref.dtype)                   # (tm, a_pad_w)
    a_exp = jnp.dot(a, e_ref[...], preferred_element_type=jnp.float32)    # (tm, (RQ+2RKV)*NHHD)

    def tile_heads(b):  # (tm, head_dim) -> (tm, num_heads*head_dim)
        return jnp.concatenate([b] * num_heads, axis=-1)

    # Rank contraction, vectorized over heads: lane-dense FMAs on (tm, NHHD).
    def contract(b_base, n_rank, r0):
        acc = None
        for r in range(n_rank):
            bt = tile_heads(p[:, b_base + r * head_dim: b_base + (r + 1) * head_dim])
            term = a_exp[:, (r0 + r) * nhhd: (r0 + r + 1) * nhhd] * bt
            acc = term if acc is None else acc + term
        return acc

    q_raw = contract(bq_off, rank_q, 0)
    k_raw = contract(bk_off, rank_kv, rank_q)
    v_raw = contract(bv_off, rank_kv, rank_q + rank_kv)

    # RoPE after the contraction. rotate_half is built from two lane rolls (XLU)
    # plus pre-masked/pre-signed sin tables, so lanes where a roll crosses a head
    # boundary are multiplied by zero. No iota / where / divide in-kernel.
    cos_t = tbl_ref[:, 0 * nhhd:1 * nhhd]
    sin_lo = tbl_ref[:, 1 * nhhd:2 * nhhd]   # = -sin on d<half, 0 elsewhere
    sin_hi = tbl_ref[:, 2 * nhhd:3 * nhhd]   # = +sin on d>=half, 0 elsewhere

    def rope(raw):
        rp = pltpu.roll(raw, shift=half, axis=1)           # raw[d - half]
        rm = pltpu.roll(raw, shift=nhhd - half, axis=1)    # raw[d + half]
        return raw * cos_t + rp * sin_hi + rm * sin_lo

    q_ref[...] = rope(q_raw).astype(q_ref.dtype)
    k_ref[...] = rope(k_raw).astype(k_ref.dtype)
    v_ref[...] = v_raw.astype(v_ref.dtype)


# ------------------------------ Wrapper ------------------------------------ #
def cp_linear_pallas(x, weights, *, num_heads, head_dim, rank_q, rank_kv,
                     tm=256, compute_dtype=jnp.bfloat16):
    Waq, Wak, Wav, Wbq, Wbk, Wbv = weights
    B, S, H = x.shape
    nhhd = num_heads * head_dim
    half = head_dim // 2
    M = B * S

    # Row tile: as large as feasible (MXU rows / per-step overhead); multiple of 8.
    tm_eff = min(tm, _round_up(M, 8))
    tm_eff = max(8, (tm_eff // 8) * 8)
    Mp = _round_up(M, tm_eff)

    # --- Fused weight  [ Bq | Bk | Bv | A(q,k,v) ], each segment padded to x128 lanes.
    wbq_w = _round_up(rank_q * head_dim, 128)
    wbkv_w = _round_up(rank_kv * head_dim, 128)
    a_w = num_heads * (rank_q + 2 * rank_kv)
    a_pad_w = _round_up(a_w, 128)
    bq_off = 0
    bk_off = bq_off + wbq_w
    bv_off = bk_off + wbkv_w
    a_off = bv_off + wbkv_w
    out_w = a_off + a_pad_w

    wf = np.zeros((H, out_w), np.float32)
    wf[:, bq_off:bq_off + rank_q * head_dim] = np.asarray(Wbq)
    wf[:, bk_off:bk_off + rank_kv * head_dim] = np.asarray(Wbk)
    wf[:, bv_off:bv_off + rank_kv * head_dim] = np.asarray(Wbv)
    # Fold the 1/rank scaling into the A weights.
    wf[:, a_off:a_off + num_heads * rank_q] = np.asarray(Waq) / rank_q
    wf[:, a_off + num_heads * rank_q:
          a_off + num_heads * (rank_q + rank_kv)] = np.asarray(Wak) / rank_kv
    wf[:, a_off + num_heads * (rank_q + rank_kv):
          a_off + a_w] = np.asarray(Wav) / rank_kv
    wf = jnp.asarray(wf, compute_dtype)

    # --- One-hot expansion matrix: A column (h*rank + r) -> head-h lane block of rank r.
    exp_w = (rank_q + 2 * rank_kv) * nhhd
    E = np.zeros((a_pad_w, exp_w), np.float32)
    col = 0
    for rank, r_base in ((rank_q, 0), (rank_kv, rank_q), (rank_kv, rank_q + rank_kv)):
        for h in range(num_heads):
            for r in range(rank):
                o = (r_base + r) * nhhd + h * head_dim
                E[col, o:o + head_dim] = 1.0
                col += 1
    E = jnp.asarray(E, compute_dtype)

    # --- Packed, lane-dense RoPE tables: [cos | -sin*(d<half) | sin*(d>=half)], head-tiled.
    cos_s, sin_s = make_rope_tables(S, head_dim)                 # (S, hd) f32
    dm = jnp.arange(head_dim)
    sin_lo = jnp.where(dm < half, -sin_s, 0.0)
    sin_hi = jnp.where(dm < half, 0.0, sin_s)
    tbl_s = jnp.concatenate([jnp.tile(t, (1, num_heads))
                             for t in (cos_s, sin_lo, sin_hi)], axis=-1)  # (S, 3*NHHD)
    tbl = jnp.broadcast_to(tbl_s[None], (B, S, 3 * nhhd)).reshape(M, 3 * nhhd)
    tbl = jnp.pad(tbl, ((0, Mp - M), (0, 0))).astype(jnp.float32)

    # --- Row-flattened (and padded) input, cast to the MXU dtype.
    x2 = x.reshape(M, H)
    x2 = jnp.pad(x2, ((0, Mp - M), (0, 0))).astype(compute_dtype)

    kernel = functools.partial(
        _cplinear_kernel, num_heads=num_heads, head_dim=head_dim,
        rank_q=rank_q, rank_kv=rank_kv,
        bq_off=bq_off, bk_off=bk_off, bv_off=bv_off, a_off=a_off, a_pad_w=a_pad_w)

    out_shape = tuple(jax.ShapeDtypeStruct((Mp, nhhd), jnp.float32) for _ in range(3))
    row = lambda i: (i, 0)
    full = lambda i: (0, 0)

    q, k, v = pl.pallas_call(
        kernel,
        out_shape=out_shape,
        grid_spec=pltpu.PrefetchScalarGridSpec(
            num_scalar_prefetch=0,
            grid=(Mp // tm_eff,),
            in_specs=[
                pl.BlockSpec((tm_eff, H), row),           # x row tile
                pl.BlockSpec((H, out_w), full),           # fused weights (grid-invariant)
                pl.BlockSpec((a_pad_w, exp_w), full),     # one-hot expansion (grid-invariant)
                pl.BlockSpec((tm_eff, 3 * nhhd), row),    # packed RoPE tables
            ],
            out_specs=tuple(pl.BlockSpec((tm_eff, nhhd), row) for _ in range(3)),
        ),
        compiler_params=pltpu.CompilerParams(
            dimension_semantics=("parallel",),            # shards rows across v7x's 2 TCs
            vmem_limit_bytes=64 * 1024 * 1024,            # explicit budget (v7x has 64 MiB)
        ),
    )(x2, wf, E, tbl)

    def rs(t):
        return t[:M].reshape(B, S, num_heads, head_dim)
    return rs(q), rs(k), rs(v)


# ------------------------------ RoPE tables --------------------------------- #
def make_rope_tables(seq_len, head_dim, base=10000.0):
    half = head_dim // 2
    inv_freq = 1.0 / (base ** (jnp.arange(0, half, dtype=jnp.float32) / half))
    pos = jnp.arange(seq_len, dtype=jnp.float32)
    ang = pos[:, None] * inv_freq[None, :]                   # (S, hd/2)
    cos = jnp.concatenate([jnp.cos(ang), jnp.cos(ang)], axis=-1)
    sin = jnp.concatenate([jnp.sin(ang), jnp.sin(ang)], axis=-1)
    return cos, sin


# --------------------------- Pure-JAX reference ----------------------------- #
def cp_linear_reference(x, weights, *, num_heads, head_dim, rank_q, rank_kv):
    Waq, Wak, Wav, Wbq, Wbk, Wbv = weights
    B, S, H = x.shape
    prec = jax.lax.Precision.HIGHEST
    mm = lambda a, w: jnp.matmul(a, w, precision=prec)

    Aq = mm(x, Waq).reshape(B, S, num_heads, rank_q)
    Ak = mm(x, Wak).reshape(B, S, num_heads, rank_kv)
    Av = mm(x, Wav).reshape(B, S, num_heads, rank_kv)
    Bq = mm(x, Wbq).reshape(B, S, rank_q, head_dim)
    Bk = mm(x, Wbk).reshape(B, S, rank_kv, head_dim)
    Bv = mm(x, Wbv).reshape(B, S, rank_kv, head_dim)

    cos, sin = make_rope_tables(S, head_dim)
    c = cos[None, :, None, :]
    s = sin[None, :, None, :]

    def rotate_half(t):
        half = t.shape[-1] // 2
        return jnp.concatenate([-t[..., half:], t[..., :half]], axis=-1)

    Bq_r = Bq * c + rotate_half(Bq) * s
    Bk_r = Bk * c + rotate_half(Bk) * s

    q = jnp.einsum('bsnr,bsrd->bsnd', Aq, Bq_r, precision=prec) / rank_q
    k = jnp.einsum('bsnr,bsrd->bsnd', Ak, Bk_r, precision=prec) / rank_kv
    v = jnp.einsum('bsnr,bsrd->bsnd', Av, Bv, precision=prec) / rank_kv
    return q, k, v


# --------------------------------- Main ------------------------------------- #
if __name__ == "__main__":
    # Small shapes consistent with the module.
    batch, seq = 2, 8
    hidden_dim, num_heads, head_dim = 32, 4, 32
    rank_q, rank_kv = 12, 1

    key = jax.random.PRNGKey(0)
    kx, k1, k2, k3, k4, k5, k6 = jax.random.split(key, 7)

    def xavier(k, fan_in, fan_out, shape):
        bound = float(np.sqrt(6.0 / (fan_in + fan_out)))
        return jax.random.uniform(k, shape, jnp.float32, -bound, bound)

    # Weights stored as (hidden, out) so the kernel does x @ W directly.
    Waq = xavier(k1, hidden_dim, num_heads * rank_q, (hidden_dim, num_heads * rank_q))
    Wak = xavier(k2, hidden_dim, num_heads * rank_kv, (hidden_dim, num_heads * rank_kv))
    Wav = xavier(k3, hidden_dim, num_heads * rank_kv, (hidden_dim, num_heads * rank_kv))
    Wbq = xavier(k4, hidden_dim, rank_q * head_dim, (hidden_dim, rank_q * head_dim))
    Wbk = xavier(k5, hidden_dim, rank_kv * head_dim, (hidden_dim, rank_kv * head_dim))
    Wbv = xavier(k6, hidden_dim, rank_kv * head_dim, (hidden_dim, rank_kv * head_dim))
    weights = (Waq, Wak, Wav, Wbq, Wbk, Wbv)

    x = jax.random.normal(kx, (batch, seq, hidden_dim), jnp.float32)

    q, k, v = cp_linear_pallas(x, weights, num_heads=num_heads, head_dim=head_dim,
                               rank_q=rank_q, rank_kv=rank_kv, tm=256)
    jax.block_until_ready((q, k, v))

    q_ref, k_ref, v_ref = cp_linear_reference(x, weights, num_heads=num_heads,
                                              head_dim=head_dim, rank_q=rank_q,
                                              rank_kv=rank_kv)

    # bf16 MXU inputs vs the f32 HIGHEST reference -> relaxed tolerance.
    np.testing.assert_allclose(np.asarray(q), np.asarray(q_ref), rtol=2e-2, atol=2e-2)
    np.testing.assert_allclose(np.asarray(k), np.asarray(k_ref), rtol=2e-2, atol=2e-2)
    np.testing.assert_allclose(np.asarray(v), np.asarray(v_ref), rtol=2e-2, atol=2e-2)

    print("KERNEL_OK")
</pallas_src>

<mosaic_0001>
module attributes {stable_mosaic.version = 11 : i64} {
  func.func @_cplinear_kernel(%arg0: i32, %arg1: memref<16x32xbf16, #tpu.memory_space<vmem>>, %arg2: memref<32x768xbf16, #tpu.memory_space<vmem>>, %arg3: memref<128x1792xbf16, #tpu.memory_space<vmem>>, %arg4: memref<16x384xf32, #tpu.memory_space<vmem>>, %arg5: memref<16x128xf32, #tpu.memory_space<vmem>>, %arg6: memref<16x128xf32, #tpu.memory_space<vmem>>, %arg7: memref<16x128xf32, #tpu.memory_space<vmem>>) attributes {dimension_semantics = [#tpu.dimension_semantics<parallel>], iteration_bounds = array<i64: 1>, scalar_prefetch = 0 : i64, scratch_operands = 0 : i64, tpu.core_type = #tpu.core_type<tc>, window_params = [{transform_indices = @transform_0, window_bounds = array<i64: 16, 32>}, {pipeline_mode = #tpu.pipeline_mode<synchronous>, transform_indices = @transform_1, window_bounds = array<i64: 32, 768>}, {pipeline_mode = #tpu.pipeline_mode<synchronous>, transform_indices = @transform_2, window_bounds = array<i64: 128, 1792>}, {transform_indices = @transform_3, window_bounds = array<i64: 16, 384>}, {transform_indices = @transform_4, window_bounds = array<i64: 16, 128>}, {transform_indices = @transform_5, window_bounds = array<i64: 16, 128>}, {transform_indices = @transform_6, window_bounds = array<i64: 16, 128>}]} {
    %c0 = arith.constant 0 : index
    %c0_0 = arith.constant 0 : index
    %0 = vector.load %arg1[%c0, %c0_0] : memref<16x32xbf16, #tpu.memory_space<vmem>>, vector<16x32xbf16>
    %c0_1 = arith.constant 0 : index
    %c0_2 = arith.constant 0 : index
    %1 = vector.load %arg2[%c0_1, %c0_2] : memref<32x768xbf16, #tpu.memory_space<vmem>>, vector<32x768xbf16>
    %cst = arith.constant dense<0.000000e+00> : vector<16x768xf32>
    %2 = tpu.matmul %0, %1, %cst {dimension_numbers = #tpu.dot_dimension_numbers<[1], [0], [0], [1], [0, 0, 1, 1], [], []>} : vector<16x32xbf16>, vector<32x768xbf16>, vector<16x768xf32> -> vector<16x768xf32>
    %3 = vector.extract_strided_slice %2 {offsets = [0, 640], sizes = [16, 128], strides = [1, 1]} : vector<16x768xf32> to vector<16x128xf32>
    %4 = arith.truncf %3 : vector<16x128xf32> to vector<16x128xbf16>
    %c0_3 = arith.constant 0 : index
    %c0_4 = arith.constant 0 : index
    %5 = vector.load %arg3[%c0_3, %c0_4] : memref<128x1792xbf16, #tpu.memory_space<vmem>>, vector<128x1792xbf16>
    %cst_5 = arith.constant dense<0.000000e+00> : vector<16x1792xf32>
    %6 = tpu.matmul %4, %5, %cst_5 {dimension_numbers = #tpu.dot_dimension_numbers<[1], [0], [0], [1], [0, 0, 1, 1], [], []>} : vector<16x128xbf16>, vector<128x1792xbf16>, vector<16x1792xf32> -> vector<16x1792xf32>
    %7 = vector.extract_strided_slice %2 {offsets = [0, 0], sizes = [16, 32], strides = [1, 1]} : vector<16x768xf32> to vector<16x32xf32>
    %8 = tpu.concatenate %7, %7, %7, %7 in 1 : vector<16x32xf32>, vector<16x32xf32>, vector<16x32xf32>, vector<16x32xf32> -> vector<16x128xf32>
    %9 = vector.extract_strided_slice %6 {offsets = [0, 0], sizes = [16, 128], strides = [1, 1]} : vector<16x1792xf32> to vector<16x128xf32>
    %10 = arith.mulf %9, %8 : vector<16x128xf32>
    %11 = vector.extract_strided_slice %2 {offsets = [0, 32], sizes = [16, 32], strides = [1, 1]} : vector<16x768xf32> to vector<16x32xf32>
    %12 = tpu.concatenate %11, %11, %11, %11 in 1 : vector<16x32xf32>, vector<16x32xf32>, vector<16x32xf32>, vector<16x32xf32> -> vector<16x128xf32>
    %13 = vector.extract_strided_slice %6 {offsets = [0, 128], sizes = [16, 128], strides = [1, 1]} : vector<16x1792xf32> to vector<16x128xf32>
    %14 = arith.mulf %13, %12 : vector<16x128xf32>
    %15 = arith.addf %10, %14 : vector<16x128xf32>
    %16 = vector.extract_strided_slice %2 {offsets = [0, 64], sizes = [16, 32], strides = [1, 1]} : vector<16x768xf32> to vector<16x32xf32>
    %17 = tpu.concatenate %16, %16, %16, %16 in 1 : vector<16x32xf32>, vector<16x32xf32>, vector<16x32xf32>, vector<16x32xf32> -> vector<16x128xf32>
    %18 = vector.extract_strided_slice %6 {offsets = [0, 256], sizes = [16, 128], strides = [1, 1]} : vector<16x1792xf32> to vector<16x128xf32>
    %19 = arith.mulf %18, %17 : vector<16x128xf32>
    %20 = arith.addf %15, %19 : vector<16x128xf32>
    %21 = vector.extract_strided_slice %2 {offsets = [0, 96], sizes = [16, 32], strides = [1, 1]} : vector<16x768xf32> to vector<16x32xf32>
    %22 = tpu.concatenate %21, %21, %21, %21 in 1 : vector<16x32xf32>, vector<16x32xf32>, vector<16x32xf32>, vector<16x32xf32> -> vector<16x128xf32>
    %23 = vector.extract_strided_slice %6 {offsets = [0, 384], sizes = [16, 128], strides = [1, 1]} : vector<16x1792xf32> to vector<16x128xf32>
    %24 = arith.mulf %23, %22 : vector<16x128xf32>
    %25 = arith.addf %20, %24 : vector<16x128xf32>
    %26 = vector.extract_strided_slice %2 {offsets = [0, 128], sizes = [16, 32], strides = [1, 1]} : vector<16x768xf32> to vector<16x32xf32>
    %27 = tpu.concatenate %26, %26, %26, %26 in 1 : vector<16x32xf32>, vector<16x32xf32>, vector<16x32xf32>, vector<16x32xf32> -> vector<16x128xf32>
    %28 = vector.extract_strided_slice %6 {offsets = [0, 512], sizes = [16, 128], strides = [1, 1]} : vector<16x1792xf32> to vector<16x128xf32>
    %29 = arith.mulf %28, %27 : vector<16x128xf32>
    %30 = arith.addf %25, %29 : vector<16x128xf32>
    %31 = vector.extract_strided_slice %2 {offsets = [0, 160], sizes = [16, 32], strides = [1, 1]} : vector<16x768xf32> to vector<16x32xf32>
    %32 = tpu.concatenate %31, %31, %31, %31 in 1 : vector<16x32xf32>, vector<16x32xf32>, vector<16x32xf32>, vector<16x32xf32> -> vector<16x128xf32>
    %33 = vector.extract_strided_slice %6 {offsets = [0, 640], sizes = [16, 128], strides = [1, 1]} : vector<16x1792xf32> to vector<16x128xf32>
    %34 = arith.mulf %33, %32 : vector<16x128xf32>
    %35 = arith.addf %30, %34 : vector<16x128xf32>
    %36 = vector.extract_strided_slice %2 {offsets = [0, 192], sizes = [16, 32], strides = [1, 1]} : vector<16x768xf32> to vector<16x32xf32>
    %37 = tpu.concatenate %36, %36, %36, %36 in 1 : vector<16x32xf32>, vector<16x32xf32>, vector<16x32xf32>, vector<16x32xf32> -> vector<16x128xf32>
    %38 = vector.extract_strided_slice %6 {offsets = [0, 768], sizes = [16, 128], strides = [1, 1]} : vector<16x1792xf32> to vector<16x128xf32>
    %39 = arith.mulf %38, %37 : vector<16x128xf32>
    %40 = arith.addf %35, %39 : vector<16x128xf32>
    %41 = vector.extract_strided_slice %2 {offsets = [0, 224], sizes = [16, 32], strides = [1, 1]} : vector<16x768xf32> to vector<16x32xf32>
    %42 = tpu.concatenate %41, %41, %41, %41 in 1 : vector<16x32xf32>, vector<16x32xf32>, vector<16x32xf32>, vector<16x32xf32> -> vector<16x128xf32>
    %43 = vector.extract_strided_slice %6 {offsets = [0, 896], sizes = [16, 128], strides = [1, 1]} : vector<16x1792xf32> to vector<16x128xf32>
    %44 = arith.mulf %43, %42 : vector<16x128xf32>
    %45 = arith.addf %40, %44 : vector<16x128xf32>
    %46 = vector.extract_strided_slice %2 {offsets = [0, 256], sizes = [16, 32], strides = [1, 1]} : vector<16x768xf32> to vector<16x32xf32>
    %47 = tpu.concatenate %46, %46, %46, %46 in 1 : vector<16x32xf32>, vector<16x32xf32>, vector<16x32xf32>, vector<16x32xf32> -> vector<16x128xf32>
    %48 = vector.extract_strided_slice %6 {offsets = [0, 1024], sizes = [16, 128], strides = [1, 1]} : vector<16x1792xf32> to vector<16x128xf32>
    %49 = arith.mulf %48, %47 : vector<16x128xf32>
    %50 = arith.addf %45, %49 : vector<16x128xf32>
    %51 = vector.extract_strided_slice %2 {offsets = [0, 288], sizes = [16, 32], strides = [1, 1]} : vector<16x768xf32> to vector<16x32xf32>
    %52 = tpu.concatenate %51, %51, %51, %51 in 1 : vector<16x32xf32>, vector<16x32xf32>, vector<16x32xf32>, vector<16x32xf32> -> vector<16x128xf32>
    %53 = vector.extract_strided_slice %6 {offsets = [0, 1152], sizes = [16, 128], strides = [1, 1]} : vector<16x1792xf32> to vector<16x128xf32>
    %54 = arith.mulf %53, %52 : vector<16x128xf32>
    %55 = arith.addf %50, %54 : vector<16x128xf32>
    %56 = vector.extract_strided_slice %2 {offsets = [0, 320], sizes = [16, 32], strides = [1, 1]} : vector<16x768xf32> to vector<16x32xf32>
    %57 = tpu.concatenate %56, %56, %56, %56 in 1 : vector<16x32xf32>, vector<16x32xf32>, vector<16x32xf32>, vector<16x32xf32> -> vector<16x128xf32>
    %58 = vector.extract_strided_slice %6 {offsets = [0, 1280], sizes = [16, 128], strides = [1, 1]} : vector<16x1792xf32> to vector<16x128xf32>
    %59 = arith.mulf %58, %57 : vector<16x128xf32>
    %60 = arith.addf %55, %59 : vector<16x128xf32>
    %61 = vector.extract_strided_slice %2 {offsets = [0, 352], sizes = [16, 32], strides = [1, 1]} : vector<16x768xf32> to vector<16x32xf32>
    %62 = tpu.concatenate %61, %61, %61, %61 in 1 : vector<16x32xf32>, vector<16x32xf32>, vector<16x32xf32>, vector<16x32xf32> -> vector<16x128xf32>
    %63 = vector.extract_strided_slice %6 {offsets = [0, 1408], sizes = [16, 128], strides = [1, 1]} : vector<16x1792xf32> to vector<16x128xf32>
    %64 = arith.mulf %63, %62 : vector<16x128xf32>
    %65 = arith.addf %60, %64 : vector<16x128xf32>
    %66 = vector.extract_strided_slice %2 {offsets = [0, 384], sizes = [16, 32], strides = [1, 1]} : vector<16x768xf32> to vector<16x32xf32>
    %67 = tpu.concatenate %66, %66, %66, %66 in 1 : vector<16x32xf32>, vector<16x32xf32>, vector<16x32xf32>, vector<16x32xf32> -> vector<16x128xf32>
    %68 = vector.extract_strided_slice %6 {offsets = [0, 1536], sizes = [16, 128], strides = [1, 1]} : vector<16x1792xf32> to vector<16x128xf32>
    %69 = arith.mulf %68, %67 : vector<16x128xf32>
    %70 = vector.extract_strided_slice %2 {offsets = [0, 512], sizes = [16, 32], strides = [1, 1]} : vector<16x768xf32> to vector<16x32xf32>
    %71 = tpu.concatenate %70, %70, %70, %70 in 1 : vector<16x32xf32>, vector<16x32xf32>, vector<16x32xf32>, vector<16x32xf32> -> vector<16x128xf32>
    %72 = vector.extract_strided_slice %6 {offsets = [0, 1664], sizes = [16, 128], strides = [1, 1]} : vector<16x1792xf32> to vector<16x128xf32>
    %73 = arith.mulf %72, %71 : vector<16x128xf32>
    %c0_6 = arith.constant 0 : index
    %c0_7 = arith.constant 0 : index
    %74 = vector.load %arg4[%c0_6, %c0_7] : memref<16x384xf32, #tpu.memory_space<vmem>>, vector<16x128xf32>
    %c0_8 = arith.constant 0 : index
    %c128 = arith.constant 128 : index
    %75 = vector.load %arg4[%c0_8, %c128] : memref<16x384xf32, #tpu.memory_space<vmem>>, vector<16x128xf32>
    %c0_9 = arith.constant 0 : index
    %c256 = arith.constant 256 : index
    %76 = vector.load %arg4[%c0_9, %c256] : memref<16x384xf32, #tpu.memory_space<vmem>>, vector<16x128xf32>
    %c16_i32 = arith.constant 16 : i32
    %77 = tpu.dynamic_rotate %65 by %c16_i32 dim 1 : vector<16x128xf32>, i32 -> vector<16x128xf32>
    %c112_i32 = arith.constant 112 : i32
    %78 = tpu.dynamic_rotate %65 by %c112_i32 dim 1 : vector<16x128xf32>, i32 -> vector<16x128xf32>
    %79 = arith.mulf %65, %74 : vector<16x128xf32>
    %80 = arith.mulf %77, %76 : vector<16x128xf32>
    %81 = arith.addf %79, %80 : vector<16x128xf32>
    %82 = arith.mulf %78, %75 : vector<16x128xf32>
    %83 = arith.addf %81, %82 : vector<16x128xf32>
    %c0_10 = arith.constant 0 : index
    %c0_11 = arith.constant 0 : index
    %84 = vector.load %arg5[%c0_10, %c0_11] : memref<16x128xf32, #tpu.memory_space<vmem>>, vector<16x128xf32>
    tpu.vector_store %arg5[%c0_10, %c0_11], %83 {strides = array<i32>} : memref<16x128xf32, #tpu.memory_space<vmem>>, vector<16x128xf32>,
    %c16_i32_12 = arith.constant 16 : i32
    %85 = tpu.dynamic_rotate %69 by %c16_i32_12 dim 1 : vector<16x128xf32>, i32 -> vector<16x128xf32>
    %c112_i32_13 = arith.constant 112 : i32
    %86 = tpu.dynamic_rotate %69 by %c112_i32_13 dim 1 : vector<16x128xf32>, i32 -> vector<16x128xf32>
    %87 = arith.mulf %69, %74 : vector<16x128xf32>
    %88 = arith.mulf %85, %76 : vector<16x128xf32>
    %89 = arith.addf %87, %88 : vector<16x128xf32>
    %90 = arith.mulf %86, %75 : vector<16x128xf32>
    %91 = arith.addf %89, %90 : vector<16x128xf32>
    %c0_14 = arith.constant 0 : index
    %c0_15 = arith.constant 0 : index
    %92 = vector.load %arg6[%c0_14, %c0_15] : memref<16x128xf32, #tpu.memory_space<vmem>>, vector<16x128xf32>
    tpu.vector_store %arg6[%c0_14, %c0_15], %91 {strides = array<i32>} : memref<16x128xf32, #tpu.memory_space<vmem>>, vector<16x128xf32>,
    %c0_16 = arith.constant 0 : index
    %c0_17 = arith.constant 0 : index
    %93 = vector.load %arg7[%c0_16, %c0_17] : memref<16x128xf32, #tpu.memory_space<vmem>>, vector<16x128xf32>
    tpu.vector_store %arg7[%c0_16, %c0_17], %73 {strides = array<i32>} : memref<16x128xf32, #tpu.memory_space<vmem>>, vector<16x128xf32>,
    return
  }
  func.func @transform_0(%arg0: i32) -> (i32, i32) {
    %c0_i32 = arith.constant 0 : i32
    %c0_i32_0 = arith.constant 0 : i32
    return %arg0, %c0_i32 : i32, i32
  }
  func.func @transform_1(%arg0: i32) -> (i32, i32) {
    %c0_i32 = arith.constant 0 : i32
    %c0_i32_0 = arith.constant 0 : i32
    %c0_i32_1 = arith.constant 0 : i32
    return %c0_i32, %c0_i32_0 : i32, i32
  }
  func.func @transform_2(%arg0: i32) -> (i32, i32) {
    %c0_i32 = arith.constant 0 : i32
    %c0_i32_0 = arith.constant 0 : i32
    %c0_i32_1 = arith.constant 0 : i32
    return %c0_i32, %c0_i32_0 : i32, i32
  }
  func.func @transform_3(%arg0: i32) -> (i32, i32) {
    %c0_i32 = arith.constant 0 : i32
    %c0_i32_0 = arith.constant 0 : i32
    return %arg0, %c0_i32 : i32, i32
  }
  func.func @transform_4(%arg0: i32) -> (i32, i32) {
    %c0_i32 = arith.constant 0 : i32
    %c0_i32_0 = arith.constant 0 : i32
    return %arg0, %c0_i32 : i32, i32
  }
  func.func @transform_5(%arg0: i32) -> (i32, i32) {
    %c0_i32 = arith.constant 0 : i32
    %c0_i32_0 = arith.constant 0 : i32
    return %arg0, %c0_i32 : i32, i32
  }
  func.func @transform_6(%arg0: i32) -> (i32, i32) {
    %c0_i32 = arith.constant 0 : i32
    %c0_i32_0 = arith.constant 0 : i32
    return %arg0, %c0_i32 : i32, i32
  }
}

</mosaic_0001>

<llo_original>
// kernel: tpu_custom_call.1
$region0: #{tpu_custom_call.1}
  #allocation0 [shape = 'u32[]', space=smem, size = 0x4, offset = 0x4, fixed_abs, tag = 'smem constant byte address 0x4 - core index']
  #allocation1 [shape = 'u32[72,128]{1,0:T(1,128)}', space=vmem, size = 0x9000, scoped, tag = 'internal scratch']
  %s0 = inlined_call_operand.hbm [shape: bf16[16,32], index: 0, kind: input, shape index: {}]
  %s1 = inlined_call_operand.hbm [shape: bf16[32,768], index: 1, kind: input, shape index: {}]
  %s2 = inlined_call_operand.hbm [shape: bf16[128,1792], index: 2, kind: input, shape index: {}]
  %s3 = inlined_call_operand.hbm [shape: f32[16,384], index: 3, kind: input, shape index: {}]
  %s4 = inlined_call_operand.hbm [shape: f32[16,128], index: 4, kind: output, shape index: {0}]
  %s5 = inlined_call_operand.hbm [shape: f32[16,128], index: 5, kind: output, shape index: {1}]
  %s6 = inlined_call_operand.hbm [shape: f32[16,128], index: 6, kind: output, shape index: {2}]
  %7 = xla_tuple %s4, %s5, %s6
  %s8 = sld [smem:[#allocation0]]
  $region58: #{tpu_custom_call.1} parent=0
    _
  %s10 = ssub.s32 1, %s8
  %s11 = scalar_select 0, %s10, %s8
  $region1: #{tpu_custom_call.1} parent=0
    #allocation2 [shape = 'u8[4096]{0}', space=vmem, size = 0x1000, scoped, tag = 'input window, operand 0, single buffered']
    #allocation3 [shape = 's32[1]{0}', space=sflag, size = 0x4, scoped, tag = 'scoped memory for tpu_custom_call.1']
    #allocation4 [shape = 's32[1]{0}', space=sflag, size = 0x4, scoped, tag = 'scoped memory for tpu_custom_call.1']
    #allocation5 [shape = 'u8[49152]{0}', space=vmem, size = 0xc000, scoped, tag = 'input window, operand 1, single buffered']
    #allocation6 [shape = 's32[1]{0}', space=sflag, size = 0x4, scoped, tag = 'scoped memory for tpu_custom_call.1']
    #allocation7 [shape = 'u8[458752]{0}', space=vmem, size = 0x70000, scoped, tag = 'input window, operand 2, single buffered']
    #allocation8 [shape = 'u8[24576]{0}', space=vmem, size = 0x6000, scoped, tag = 'input window, operand 3, single buffered']
    #allocation9 [shape = 's32[1]{0}', space=sflag, size = 0x4, scoped, tag = 'scoped memory for tpu_custom_call.1']
    #allocation10 [shape = 'u8[8192]{0}', space=vmem, size = 0x2000, scoped, tag = 'output window, operand 0, single buffered']
    #allocation11 [shape = 'u8[8192]{0}', space=vmem, size = 0x2000, scoped, tag = 'output window, operand 1, single buffered']
    #allocation12 [shape = 's32[1]{0}', space=sflag, size = 0x4, scoped, tag = 'scoped memory for tpu_custom_call.1']
    #allocation13 [shape = 'u8[8192]{0}', space=vmem, size = 0x2000, scoped, tag = 'output window, operand 2, single buffered']
    %12 = vsyncpa [#allocation3], 0
    %13 = vsyncpa [#allocation6], 0
    %14 = vsyncpa [#allocation9], 0
    %15 = vsyncpa [#allocation4], 0
    %16 = vsyncpa [#allocation12], 0
    // Predicated region
    $region2: #{tpu_custom_call.1} parent=1 // pred_check
      _
    $region3: #{tpu_custom_call.1} parent=1 // pred_check_branch
      %18 = sbr.rel (0) target = $region5
    $region4: #{tpu_custom_call.1} parent=1 // pred_region
      %20 = vsyncadd [#allocation3], 0
      %s21 = sshll.u32 %s0, 4
      %s22 = int_to_ptr.hbm [resolvable:$true] %s21
      %s23 = sshll.u32 [#allocation2], 4
      %s24 = int_to_ptr.vmem [resolvable:$true] %s23
      %29 = dma.hbm_to_vmem [thread:$0]  %s22, 128, %s24, [#allocation3], 64, 64, 4
    $region5: #{tpu_custom_call.1} parent=1 // pred_fallthru
      _
    // Predicated region
    $region6: #{tpu_custom_call.1} parent=1 // pred_check
      _
    $region7: #{tpu_custom_call.1} parent=1 // pred_check_branch
      %31 = sbr.rel (0) target = $region9
    $region8: #{tpu_custom_call.1} parent=1 // pred_region
      %33 = vsyncadd [#allocation6], 0
      %s34 = sshll.u32 %s1, 4
      %s35 = int_to_ptr.hbm [resolvable:$true] %s34
      %s36 = sshll.u32 [#allocation5], 4
      %s37 = int_to_ptr.vmem [resolvable:$true] %s36
      %42 = dma.hbm_to_vmem [thread:$0]  %s35, 1536, %s37, [#allocation6], 384, 384, 24
    $region9: #{tpu_custom_call.1} parent=1 // pred_fallthru
      _
    // Predicated region
    $region10: #{tpu_custom_call.1} parent=1 // pred_check
      _
    $region11: #{tpu_custom_call.1} parent=1 // pred_check_branch
      %44 = sbr.rel (0) target = $region13
    $region12: #{tpu_custom_call.1} parent=1 // pred_region
      %46 = vsyncadd [#allocation6], 0
      %s47 = sshll.u32 %s2, 4
      %s48 = int_to_ptr.hbm [resolvable:$true] %s47
      %s49 = sshll.u32 [#allocation7], 4
      %s50 = int_to_ptr.vmem [resolvable:$true] %s49
      %55 = dma.hbm_to_vmem [thread:$0]  %s48, 14336, %s50, [#allocation6], 896, 896, 56
    $region13: #{tpu_custom_call.1} parent=1 // pred_fallthru
      _
    // Predicated region
    $region14: #{tpu_custom_call.1} parent=1 // pred_check
      _
    $region15: #{tpu_custom_call.1} parent=1 // pred_check_branch
      %57 = sbr.rel (0) target = $region17
    $region16: #{tpu_custom_call.1} parent=1 // pred_region
      %59 = vsyncadd [#allocation9], 0
      %s60 = sshll.u32 %s3, 4
      %s61 = int_to_ptr.hbm [resolvable:$true] %s60
      %s62 = sshll.u32 [#allocation8], 4
      %s63 = int_to_ptr.vmem [resolvable:$true] %s62
      %68 = dma.hbm_to_vmem [thread:$0]  %s61, 768, %s63, [#allocation9], 384, 384, 24
    $region17: #{tpu_custom_call.1} parent=1 // pred_fallthru
      _
    // Predicated region
    $region18: #{tpu_custom_call.1} parent=1 // pred_check
      _
    $region19: #{tpu_custom_call.1} parent=1 // pred_check_branch
      %70 = sbr.rel (0) target = $region21
    $region20: #{tpu_custom_call.1} parent=1 // pred_region
      %72 = dma.done [#allocation3], 128
    $region21: #{tpu_custom_call.1} parent=1 // pred_fallthru
      _
    // Predicated region
    $region22: #{tpu_custom_call.1} parent=1 // pred_check
      _
    $region23: #{tpu_custom_call.1} parent=1 // pred_check_branch
      %74 = sbr.rel (0) target = $region25
    $region24: #{tpu_custom_call.1} parent=1 // pred_region
      %76 = dma.done [#allocation6], 1536
    $region25: #{tpu_custom_call.1} parent=1 // pred_fallthru
      _
    // Predicated region
    $region26: #{tpu_custom_call.1} parent=1 // pred_check
      _
    $region27: #{tpu_custom_call.1} parent=1 // pred_check_branch
      %78 = sbr.rel (0) target = $region29
    $region28: #{tpu_custom_call.1} parent=1 // pred_region
      %80 = dma.done [#allocation6], 14336
    $region29: #{tpu_custom_call.1} parent=1 // pred_fallthru
      _
    // Predicated region
    $region30: #{tpu_custom_call.1} parent=1 // pred_check
      _
    $region31: #{tpu_custom_call.1} parent=1 // pred_check_branch
      %82 = sbr.rel (0) target = $region33
    $region32: #{tpu_custom_call.1} parent=1 // pred_region
      %84 = dma.done [#allocation9], 768
    $region33: #{tpu_custom_call.1} parent=1 // pred_fallthru
      _
    %v86 = vld [vmem:[#allocation2] sm:$0xf]
    %v87 = vld [vmem:[#allocation2 + $0x4] sm:$0xf]
    %v88 = vld [vmem:[#allocation5] sm:$0xff]
    %v89 = vld [vmem:[#allocation5 + $0x8] sm:$0xff]
    %v90 = vld [vmem:[#allocation5 + $0x10] sm:$0xff]
    %v91 = vld [vmem:[#allocation5 + $0x18] sm:$0xff]
    %v92 = vld [vmem:[#allocation5 + $0x20] sm:$0xff]
    %v93 = vld [vmem:[#allocation5 + $0x28] sm:$0xff]
    %v94 = vld [vmem:[#allocation5 + $0x30] sm:$0xff]
    %v95 = vld [vmem:[#allocation5 + $0x38] sm:$0xff]
    %v96 = vld [vmem:[#allocation5 + $0x40] sm:$0xff]
    %v97 = vld [vmem:[#allocation5 + $0x48] sm:$0xff]
    %v98 = vld [vmem:[#allocation5 + $0x50] sm:$0xff]
    %v99 = vld [vmem:[#allocation5 + $0x58] sm:$0xff]
    %v102 = vunpack.c.l.b16 %v86
    %v103 = vunpack.c.l.b16 %v87
    %v104 = vpack.c.b16 %v103, %v102
    %v117 = vunpack.c.l.b16 %v88
    %v118 = vunpack.c.h.b16 %v88
    %v119 = vunpack.c.l.b16 %v89
    %v120 = vunpack.c.h.b16 %v89
    %v121 = vunpack.c.l.b16 %v90
    %v122 = vunpack.c.h.b16 %v90
    %v123 = vunpack.c.l.b16 %v91
    %v124 = vunpack.c.h.b16 %v91
    %v125 = vunpack.c.l.b16 %v92
    %v126 = vunpack.c.h.b16 %v92
    %v127 = vunpack.c.l.b16 %v93
    %v128 = vunpack.c.h.b16 %v93
    %v129 = vunpack.c.l.b16 %v94
    %v130 = vunpack.c.h.b16 %v94
    %v131 = vunpack.c.l.b16 %v95
    %v132 = vunpack.c.h.b16 %v95
    %v133 = vunpack.c.l.b16 %v96
    %v134 = vunpack.c.h.b16 %v96
    %v135 = vunpack.c.l.b16 %v97
    %v136 = vunpack.c.h.b16 %v97
    %v137 = vunpack.c.l.b16 %v98
    %v138 = vunpack.c.h.b16 %v98
    %v139 = vunpack.c.l.b16 %v99
    %v140 = vunpack.c.h.b16 %v99
    %v141 = vpack.c.b16 %v123, %v117
    %v142 = vpack.c.b16 %v124, %v118
    %v143 = vpack.c.b16 %v125, %v119
    %v144 = vpack.c.b16 %v126, %v120
    %v145 = vpack.c.b16 %v127, %v121
    %v146 = vpack.c.b16 %v128, %v122
    %v147 = vpack.c.b16 %v135, %v129
    %v148 = vpack.c.b16 %v136, %v130
    %v149 = vpack.c.b16 %v137, %v131
    %v150 = vpack.c.b16 %v138, %v132
    %v151 = vpack.c.b16 %v139, %v133
    %v152 = vpack.c.b16 %v140, %v134
    %vm165 = vcmask 261120
    %v167 = vsel %vm165, %v104, 0
    %169 = vmatpush.bf16.msra.mxu0 0
    %170 = vmatpush.bf16.msra.mxu0 0
    %171 = vmatpush.bf16.msra.mxu0 0
    %172 = vmatpush.bf16.msra.mxu0 0
    %173 = vmatpush.bf16.msra.mxu0 0
    %174 = vmatpush.bf16.msra.mxu0 0
    %175 = vmatpush.bf16.msra.mxu0 %v147
    %176 = vmatpush.bf16.msra.mxu0 %v141
    %177 = vmatmul.bf16.gmra.mxu0 %v167
    %v178 = vpop.f32.mrf.mxu0
    %v179 = vadd.f32 0.0, %v178
    %v180 = vpop.f32.mrf.mxu0
    %v181 = vadd.f32 0.0, %v180
    %182 = vdwg.mxu0
    %183 = vmatpush.bf16.msra.mxu0 0
    %184 = vmatpush.bf16.msra.mxu0 0
    %185 = vmatpush.bf16.msra.mxu0 0
    %186 = vmatpush.bf16.msra.mxu0 0
    %187 = vmatpush.bf16.msra.mxu0 0
    %188 = vmatpush.bf16.msra.mxu0 0
    %189 = vmatpush.bf16.msra.mxu0 %v148
    %190 = vmatpush.bf16.msra.mxu0 %v142
    %191 = vmatmul.bf16.gmra.mxu0 %v167
    %v192 = vpop.f32.mrf.mxu0
    %v193 = vadd.f32 0.0, %v192
    %v194 = vpop.f32.mrf.mxu0
    %v195 = vadd.f32 0.0, %v194
    %196 = vdwg.mxu0
    %197 = vmatpush.bf16.msra.mxu0 0
    %198 = vmatpush.bf16.msra.mxu0 0
    %199 = vmatpush.bf16.msra.mxu0 0
    %200 = vmatpush.bf16.msra.mxu0 0
    %201 = vmatpush.bf16.msra.mxu0 0
    %202 = vmatpush.bf16.msra.mxu0 0
    %203 = vmatpush.bf16.msra.mxu0 %v149
    %204 = vmatpush.bf16.msra.mxu0 %v143
    %205 = vmatmul.bf16.gmra.mxu0 %v167
    %v206 = vpop.f32.mrf.mxu0
    %v207 = vadd.f32 0.0, %v206
    %v208 = vpop.f32.mrf.mxu0
    %v209 = vadd.f32 0.0, %v208
    %210 = vdwg.mxu0
    %211 = vmatpush.bf16.msra.mxu0 0
    %212 = vmatpush.bf16.msra.mxu0 0
    %213 = vmatpush.bf16.msra.mxu0 0
    %214 = vmatpush.bf16.msra.mxu0 0
    %215 = vmatpush.bf16.msra.mxu0 0
    %216 = vmatpush.bf16.msra.mxu0 0
    %217 = vmatpush.bf16.msra.mxu0 %v150
    %218 = vmatpush.bf16.msra.mxu0 %v144
    %219 = vmatmul.bf16.gmra.mxu0 %v167
    %v220 = vpop.f32.mrf.mxu0
    %v221 = vadd.f32 0.0, %v220
    %v222 = vpop.f32.mrf.mxu0
    %v223 = vadd.f32 0.0, %v222
    %224 = vdwg.mxu0
    %225 = vmatpush.bf16.msra.mxu0 0
    %226 = vmatpush.bf16.msra.mxu0 0
    %227 = vmatpush.bf16.msra.mxu0 0
    %228 = vmatpush.bf16.msra.mxu0 0
    %229 = vmatpush.bf16.msra.mxu0 0
    %230 = vmatpush.bf16.msra.mxu0 0
    %231 = vmatpush.bf16.msra.mxu0 %v151
    %232 = vmatpush.bf16.msra.mxu0 %v145
    %233 = vmatmul.bf16.gmra.mxu0 %v167
    %v234 = vpop.f32.mrf.mxu0
    %v235 = vadd.f32 0.0, %v234
    %v236 = vpop.f32.mrf.mxu0
    %v237 = vadd.f32 0.0, %v236
    %238 = vdwg.mxu0
    %239 = vmatpush.bf16.msra.mxu0 0
    %240 = vmatpush.bf16.msra.mxu0 0
    %241 = vmatpush.bf16.msra.mxu0 0
    %242 = vmatpush.bf16.msra.mxu0 0
    %243 = vmatpush.bf16.msra.mxu0 0
    %244 = vmatpush.bf16.msra.mxu0 0
    %245 = vmatpush.bf16.msra.mxu0 %v152
    %246 = vmatpush.bf16.msra.mxu0 %v146
    %247 = vmatmul.bf16.gmra.mxu0 %v167
    %v248 = vpop.f32.mrf.mxu0
    %v249 = vadd.f32 0.0, %v248
    %v250 = vpop.f32.mrf.mxu0
    %v251 = vadd.f32 0.0, %v250
    %252 = vdwg.mxu0
    %v253 = vpack.c.bf16 %v251, %v249
    %v254 = vld [vmem:[#allocation7] sm:$0xff]
    %v255 = vld [vmem:[#allocation7 + $0x8] sm:$0xff]
    %v256 = vld [vmem:[#allocation7 + $0x10] sm:$0xff]
    %v257 = vld [vmem:[#allocation7 + $0x18] sm:$0xff]
    %v258 = vld [vmem:[#allocation7 + $0x20] sm:$0xff]
    %v259 = vld [vmem:[#allocation7 + $0x28] sm:$0xff]
    %v260 = vld [vmem:[#allocation7 + $0x30] sm:$0xff]
    %v261 = vld [vmem:[#allocation7 + $0x38] sm:$0xff]
    %v262 = vld [vmem:[#allocation7 + $0x40] sm:$0xff]
    %v263 = vld [vmem:[#allocation7 + $0x48] sm:$0xff]
    %v264 = vld [vmem:[#allocation7 + $0x50] sm:$0xff]
    %v265 = vld [vmem:[#allocation7 + $0x58] sm:$0xff]
    %v266 = vld [vmem:[#allocation7 + $0x60] sm:$0xff]
    %v267 = vld [vmem:[#allocation7 + $0x68] sm:$0xff]
    %v268 = vld [vmem:[#allocation7 + $0x70] sm:$0xff]
    %v269 = vld [vmem:[#allocation7 + $0x78] sm:$0xff]
    %v270 = vld [vmem:[#allocation7 + $0x80] sm:$0xff]
    %v271 = vld [vmem:[#allocation7 + $0x88] sm:$0xff]
    %v272 = vld [vmem:[#allocation7 + $0x90] sm:$0xff]
    %v273 = vld [vmem:[#allocation7 + $0x98] sm:$0xff]
    %v274 = vld [vmem:[#allocation7 + $0xa0] sm:$0xff]
    %v275 = vld [vmem:[#allocation7 + $0xa8] sm:$0xff]
    %v276 = vld [vmem:[#allocation7 + $0xb0] sm:$0xff]
    %v277 = vld [vmem:[#allocation7 + $0xb8] sm:$0xff]
    %v278 = vld [vmem:[#allocation7 + $0xc0] sm:$0xff]
    %v279 = vld [vmem:[#allocation7 + $0xc8] sm:$0xff]
    %v280 = vld [vmem:[#allocation7 + $0xd0] sm:$0xff]
    %v281 = vld [vmem:[#allocation7 + $0xd8] sm:$0xff]
    %v282 = vld [vmem:[#allocation7 + $0xe0] sm:$0xff]
    %v283 = vld [vmem:[#allocation7 + $0xe8] sm:$0xff]
    %v284 = vld [vmem:[#allocation7 + $0xf0] sm:$0xff]
    %v285 = vld [vmem:[#allocation7 + $0xf8] sm:$0xff]
    %v286 = vld [vmem:[#allocation7 + $0x100] sm:$0xff]
    %v287 = vld [vmem:[#allocation7 + $0x108] sm:$0xff]
    %v288 = vld [vmem:[#allocation7 + $0x110] sm:$0xff]
    %v289 = vld [vmem:[#allocation7 + $0x118] sm:$0xff]
    %v290 = vld [vmem:[#allocation7 + $0x120] sm:$0xff]
    %v291 = vld [vmem:[#allocation7 + $0x128] sm:$0xff]
    %v292 = vld [vmem:[#allocation7 + $0x130] sm:$0xff]
    %v293 = vld [vmem:[#allocation7 + $0x138] sm:$0xff]
    %v294 = vld [vmem:[#allocation7 + $0x140] sm:$0xff]
    %v295 = vld [vmem:[#allocation7 + $0x148] sm:$0xff]
    %v296 = vld [vmem:[#allocation7 + $0x150] sm:$0xff]
    %v297 = vld [vmem:[#allocation7 + $0x158] sm:$0xff]
    %v298 = vld [vmem:[#allocation7 + $0x160] sm:$0xff]
    %v299 = vld [vmem:[#allocation7 + $0x168] sm:$0xff]
    %v300 = vld [vmem:[#allocation7 + $0x170] sm:$0xff]
    %v301 = vld [vmem:[#allocation7 + $0x178] sm:$0xff]
    %v302 = vld [vmem:[#allocation7 + $0x180] sm:$0xff]
    %v303 = vld [vmem:[#allocation7 + $0x188] sm:$0xff]
    %v304 = vld [vmem:[#allocation7 + $0x190] sm:$0xff]
    %v305 = vld [vmem:[#allocation7 + $0x198] sm:$0xff]
    %v306 = vld [vmem:[#allocation7 + $0x1a0] sm:$0xff]
    %v307 = vld [vmem:[#allocation7 + $0x1a8] sm:$0xff]
    %v308 = vld [vmem:[#allocation7 + $0x1b0] sm:$0xff]
    %v309 = vld [vmem:[#allocation7 + $0x1b8] sm:$0xff]
    %v310 = vld [vmem:[#allocation7 + $0x1c0] sm:$0xff]
    %v311 = vld [vmem:[#allocation7 + $0x1c8] sm:$0xff]
    %v312 = vld [vmem:[#allocation7 + $0x1d0] sm:$0xff]
    %v313 = vld [vmem:[#allocation7 + $0x1d8] sm:$0xff]
    %v314 = vld [vmem:[#allocation7 + $0x1e0] sm:$0xff]
    %v315 = vld [vmem:[#allocation7 + $0x1e8] sm:$0xff]
    %v316 = vld [vmem:[#allocation7 + $0x1f0] sm:$0xff]
    %v317 = vld [vmem:[#allocation7 + $0x1f8] sm:$0xff]
    %v318 = vld [vmem:[#allocation7 + $0x200] sm:$0xff]
    %v319 = vld [vmem:[#allocation7 + $0x208] sm:$0xff]
    %v320 = vld [vmem:[#allocation7 + $0x210] sm:$0xff]
    %v321 = vld [vmem:[#allocation7 + $0x218] sm:$0xff]
    %v322 = vld [vmem:[#allocation7 + $0x220] sm:$0xff]
    %v323 = vld [vmem:[#allocation7 + $0x228] sm:$0xff]
    %v324 = vld [vmem:[#allocation7 + $0x230] sm:$0xff]
    %v325 = vld [vmem:[#allocation7 + $0x238] sm:$0xff]
    %v326 = vld [vmem:[#allocation7 + $0x240] sm:$0xff]
    %v327 = vld [vmem:[#allocation7 + $0x248] sm:$0xff]
    %v328 = vld [vmem:[#allocation7 + $0x250] sm:$0xff]
    %v329 = vld [vmem:[#allocation7 + $0x258] sm:$0xff]
    %v330 = vld [vmem:[#allocation7 + $0x260] sm:$0xff]
    %v331 = vld [vmem:[#allocation7 + $0x268] sm:$0xff]
    %v332 = vld [vmem:[#allocation7 + $0x270] sm:$0xff]
    %v333 = vld [vmem:[#allocation7 + $0x278] sm:$0xff]
    %v334 = vld [vmem:[#allocation7 + $0x280] sm:$0xff]
    %v335 = vld [vmem:[#allocation7 + $0x288] sm:$0xff]
    %v336 = vld [vmem:[#allocation7 + $0x290] sm:$0xff]
    %v337 = vld [vmem:[#allocation7 + $0x298] sm:$0xff]
    %v338 = vld [vmem:[#allocation7 + $0x2a0] sm:$0xff]
    %v339 = vld [vmem:[#allocation7 + $0x2a8] sm:$0xff]
    %v340 = vld [vmem:[#allocation7 + $0x2b0] sm:$0xff]
    %v341 = vld [vmem:[#allocation7 + $0x2b8] sm:$0xff]
    %v342 = vld [vmem:[#allocation7 + $0x2c0] sm:$0xff]
    %v343 = vld [vmem:[#allocation7 + $0x2c8] sm:$0xff]
    %v344 = vld [vmem:[#allocation7 + $0x2d0] sm:$0xff]
    %v345 = vld [vmem:[#allocation7 + $0x2d8] sm:$0xff]
    %v346 = vld [vmem:[#allocation7 + $0x2e0] sm:$0xff]
    %v347 = vld [vmem:[#allocation7 + $0x2e8] sm:$0xff]
    %v348 = vld [vmem:[#allocation7 + $0x2f0] sm:$0xff]
    %v349 = vld [vmem:[#allocation7 + $0x2f8] sm:$0xff]
    %v350 = vld [vmem:[#allocation7 + $0x300] sm:$0xff]
    %v351 = vld [vmem:[#allocation7 + $0x308] sm:$0xff]
    %v352 = vld [vmem:[#allocation7 + $0x310] sm:$0xff]
    %v353 = vld [vmem:[#allocation7 + $0x318] sm:$0xff]
    %v354 = vld [vmem:[#allocation7 + $0x320] sm:$0xff]
    %v355 = vld [vmem:[#allocation7 + $0x328] sm:$0xff]
    %v356 = vld [vmem:[#allocation7 + $0x330] sm:$0xff]
    %v357 = vld [vmem:[#allocation7 + $0x338] sm:$0xff]
    %v358 = vld [vmem:[#allocation7 + $0x340] sm:$0xff]
    %v359 = vld [vmem:[#allocation7 + $0x348] sm:$0xff]
    %v360 = vld [vmem:[#allocation7 + $0x350] sm:$0xff]
    %v361 = vld [vmem:[#allocation7 + $0x358] sm:$0xff]
    %v362 = vld [vmem:[#allocation7 + $0x360] sm:$0xff]
    %v363 = vld [vmem:[#allocation7 + $0x368] sm:$0xff]
    %v364 = vld [vmem:[#allocation7 + $0x370] sm:$0xff]
    %v365 = vld [vmem:[#allocation7 + $0x378] sm:$0xff]
    %v478 = vunpack.c.l.b16 %v254
    %v479 = vunpack.c.h.b16 %v254
    %v480 = vunpack.c.l.b16 %v255
    %v481 = vunpack.c.h.b16 %v255
    %v482 = vunpack.c.l.b16 %v256
    %v483 = vunpack.c.h.b16 %v256
    %v484 = vunpack.c.l.b16 %v257
    %v485 = vunpack.c.h.b16 %v257
    %v486 = vunpack.c.l.b16 %v258
    %v487 = vunpack.c.h.b16 %v258
    %v488 = vunpack.c.l.b16 %v259
    %v489 = vunpack.c.h.b16 %v259
    %v490 = vunpack.c.l.b16 %v260
    %v491 = vunpack.c.h.b16 %v260
    %v492 = vunpack.c.l.b16 %v261
    %v493 = vunpack.c.h.b16 %v261
    %v494 = vunpack.c.l.b16 %v262
    %v495 = vunpack.c.h.b16 %v262
    %v496 = vunpack.c.l.b16 %v263
    %v497 = vunpack.c.h.b16 %v263
    %v498 = vunpack.c.l.b16 %v264
    %v499 = vunpack.c.h.b16 %v264
    %v500 = vunpack.c.l.b16 %v265
    %v501 = vunpack.c.h.b16 %v265
    %v502 = vunpack.c.l.b16 %v266
    %v503 = vunpack.c.h.b16 %v266
    %v504 = vunpack.c.l.b16 %v267
    %v505 = vunpack.c.h.b16 %v267
    %v506 = vunpack.c.l.b16 %v268
    %v507 = vunpack.c.h.b16 %v268
    %v508 = vunpack.c.l.b16 %v269
    %v509 = vunpack.c.h.b16 %v269
    %v510 = vunpack.c.l.b16 %v270
    %v511 = vunpack.c.h.b16 %v270
    %v512 = vunpack.c.l.b16 %v271
    %v513 = vunpack.c.h.b16 %v271
    %v514 = vunpack.c.l.b16 %v272
    %v515 = vunpack.c.h.b16 %v272
    %v516 = vunpack.c.l.b16 %v273
    %v517 = vunpack.c.h.b16 %v273
    %v518 = vunpack.c.l.b16 %v274
    %v519 = vunpack.c.h.b16 %v274
    %v520 = vunpack.c.l.b16 %v275
    %v521 = vunpack.c.h.b16 %v275
    %v522 = vunpack.c.l.b16 %v276
    %v523 = vunpack.c.h.b16 %v276
    %v524 = vunpack.c.l.b16 %v277
    %v525 = vunpack.c.h.b16 %v277
    %v526 = vunpack.c.l.b16 %v278
    %v527 = vunpack.c.h.b16 %v278
    %v528 = vunpack.c.l.b16 %v279
    %v529 = vunpack.c.h.b16 %v279
    %v530 = vunpack.c.l.b16 %v280
    %v531 = vunpack.c.h.b16 %v280
    %v532 = vunpack.c.l.b16 %v281
    %v533 = vunpack.c.h.b16 %v281
    %v534 = vunpack.c.l.b16 %v282
    %v535 = vunpack.c.h.b16 %v282
    %v536 = vunpack.c.l.b16 %v283
    %v537 = vunpack.c.h.b16 %v283
    %v538 = vunpack.c.l.b16 %v284
    %v539 = vunpack.c.h.b16 %v284
    %v540 = vunpack.c.l.b16 %v285
    %v541 = vunpack.c.h.b16 %v285
    %v542 = vunpack.c.l.b16 %v286
    %v543 = vunpack.c.h.b16 %v286
    %v544 = vunpack.c.l.b16 %v287
    %v545 = vunpack.c.h.b16 %v287
    %v546 = vunpack.c.l.b16 %v288
    %v547 = vunpack.c.h.b16 %v288
    %v548 = vunpack.c.l.b16 %v289
    %v549 = vunpack.c.h.b16 %v289
    %v550 = vunpack.c.l.b16 %v290
    %v551 = vunpack.c.h.b16 %v290
    %v552 = vunpack.c.l.b16 %v291
    %v553 = vunpack.c.h.b16 %v291
    %v554 = vunpack.c.l.b16 %v292
    %v555 = vunpack.c.h.b16 %v292
    %v556 = vunpack.c.l.b16 %v293
    %v557 = vunpack.c.h.b16 %v293
    %v558 = vunpack.c.l.b16 %v294
    %v559 = vunpack.c.h.b16 %v294
    %v560 = vunpack.c.l.b16 %v295
    %v561 = vunpack.c.h.b16 %v295
    %v562 = vunpack.c.l.b16 %v296
    %v563 = vunpack.c.h.b16 %v296
    %v564 = vunpack.c.l.b16 %v297
    %v565 = vunpack.c.h.b16 %v297
    %v566 = vunpack.c.l.b16 %v298
    %v567 = vunpack.c.h.b16 %v298
    %v568 = vunpack.c.l.b16 %v299
    %v569 = vunpack.c.h.b16 %v299
    %v570 = vunpack.c.l.b16 %v300
    %v571 = vunpack.c.h.b16 %v300
    %v572 = vunpack.c.l.b16 %v301
    %v573 = vunpack.c.h.b16 %v301
    %v574 = vunpack.c.l.b16 %v302
    %v575 = vunpack.c.h.b16 %v302
    %v576 = vunpack.c.l.b16 %v303
    %v577 = vunpack.c.h.b16 %v303
    %v578 = vunpack.c.l.b16 %v304
    %v579 = vunpack.c.h.b16 %v304
    %v580 = vunpack.c.l.b16 %v305
    %v581 = vunpack.c.h.b16 %v305
    %v582 = vunpack.c.l.b16 %v306
    %v583 = vunpack.c.h.b16 %v306
    %v584 = vunpack.c.l.b16 %v307
    %v585 = vunpack.c.h.b16 %v307
    %v586 = vunpack.c.l.b16 %v308
    %v587 = vunpack.c.h.b16 %v308
    %v588 = vunpack.c.l.b16 %v309
    %v589 = vunpack.c.h.b16 %v309
    %v590 = vunpack.c.l.b16 %v310
    %v591 = vunpack.c.h.b16 %v310
    %v592 = vunpack.c.l.b16 %v311
    %v593 = vunpack.c.h.b16 %v311
    %v594 = vunpack.c.l.b16 %v312
    %v595 = vunpack.c.h.b16 %v312
    %v596 = vunpack.c.l.b16 %v313
    %v597 = vunpack.c.h.b16 %v313
    %v598 = vunpack.c.l.b16 %v314
    %v599 = vunpack.c.h.b16 %v314
    %v600 = vunpack.c.l.b16 %v315
    %v601 = vunpack.c.h.b16 %v315
    %v602 = vunpack.c.l.b16 %v316
    %v603 = vunpack.c.h.b16 %v316
    %v604 = vunpack.c.l.b16 %v317
    %v605 = vunpack.c.h.b16 %v317
    %v606 = vunpack.c.l.b16 %v318
    %v607 = vunpack.c.h.b16 %v318
    %v608 = vunpack.c.l.b16 %v319
    %v609 = vunpack.c.h.b16 %v319
    %v610 = vunpack.c.l.b16 %v320
    %v611 = vunpack.c.h.b16 %v320
    %v612 = vunpack.c.l.b16 %v321
    %v613 = vunpack.c.h.b16 %v321
    %v614 = vunpack.c.l.b16 %v322
    %v615 = vunpack.c.h.b16 %v322
    %v616 = vunpack.c.l.b16 %v323
    %v617 = vunpack.c.h.b16 %v323
    %v618 = vunpack.c.l.b16 %v324
    %v619 = vunpack.c.h.b16 %v324
    %v620 = vunpack.c.l.b16 %v325
    %v621 = vunpack.c.h.b16 %v325
    %v622 = vunpack.c.l.b16 %v326
    %v623 = vunpack.c.h.b16 %v326
    %v624 = vunpack.c.l.b16 %v327
    %v625 = vunpack.c.h.b16 %v327
    %v626 = vunpack.c.l.b16 %v328
    %v627 = vunpack.c.h.b16 %v328
    %v628 = vunpack.c.l.b16 %v329
    %v629 = vunpack.c.h.b16 %v329
    %v630 = vunpack.c.l.b16 %v330
    %v631 = vunpack.c.h.b16 %v330
    %v632 = vunpack.c.l.b16 %v331
    %v633 = vunpack.c.h.b16 %v331
    %v634 = vunpack.c.l.b16 %v332
    %v635 = vunpack.c.h.b16 %v332
    %v636 = vunpack.c.l.b16 %v333
    %v637 = vunpack.c.h.b16 %v333
    %v638 = vunpack.c.l.b16 %v334
    %v639 = vunpack.c.h.b16 %v334
    %v640 = vunpack.c.l.b16 %v335
    %v641 = vunpack.c.h.b16 %v335
    %v642 = vunpack.c.l.b16 %v336
    %v643 = vunpack.c.h.b16 %v336
    %v644 = vunpack.c.l.b16 %v337
    %v645 = vunpack.c.h.b16 %v337
    %v646 = vunpack.c.l.b16 %v338
    %v647 = vunpack.c.h.b16 %v338
    %v648 = vunpack.c.l.b16 %v339
    %v649 = vunpack.c.h.b16 %v339
    %v650 = vunpack.c.l.b16 %v340
    %v651 = vunpack.c.h.b16 %v340
    %v652 = vunpack.c.l.b16 %v341
    %v653 = vunpack.c.h.b16 %v341
    %v654 = vunpack.c.l.b16 %v342
    %v655 = vunpack.c.h.b16 %v342
    %v656 = vunpack.c.l.b16 %v343
    %v657 = vunpack.c.h.b16 %v343
    %v658 = vunpack.c.l.b16 %v344
    %v659 = vunpack.c.h.b16 %v344
    %v660 = vunpack.c.l.b16 %v345
    %v661 = vunpack.c.h.b16 %v345
    %v662 = vunpack.c.l.b16 %v346
    %v663 = vunpack.c.h.b16 %v346
    %v664 = vunpack.c.l.b16 %v347
    %v665 = vunpack.c.h.b16 %v347
    %v666 = vunpack.c.l.b16 %v348
    %v667 = vunpack.c.h.b16 %v348
    %v668 = vunpack.c.l.b16 %v349
    %v669 = vunpack.c.h.b16 %v349
    %v670 = vunpack.c.l.b16 %v350
    %v671 = vunpack.c.h.b16 %v350
    %v672 = vunpack.c.l.b16 %v351
    %v673 = vunpack.c.h.b16 %v351
    %v674 = vunpack.c.l.b16 %v352
    %v675 = vunpack.c.h.b16 %v352
    %v676 = vunpack.c.l.b16 %v353
    %v677 = vunpack.c.h.b16 %v353
    %v678 = vunpack.c.l.b16 %v354
    %v679 = vunpack.c.h.b16 %v354
    %v680 = vunpack.c.l.b16 %v355
    %v681 = vunpack.c.h.b16 %v355
    %v682 = vunpack.c.l.b16 %v356
    %v683 = vunpack.c.h.b16 %v356
    %v684 = vunpack.c.l.b16 %v357
    %v685 = vunpack.c.h.b16 %v357
    %v686 = vunpack.c.l.b16 %v358
    %v687 = vunpack.c.h.b16 %v358
    %v688 = vunpack.c.l.b16 %v359
    %v689 = vunpack.c.h.b16 %v359
    %v690 = vunpack.c.l.b16 %v360
    %v691 = vunpack.c.h.b16 %v360
    %v692 = vunpack.c.l.b16 %v361
    %v693 = vunpack.c.h.b16 %v361
    %v694 = vunpack.c.l.b16 %v362
    %v695 = vunpack.c.h.b16 %v362
    %v696 = vunpack.c.l.b16 %v363
    %v697 = vunpack.c.h.b16 %v363
    %v698 = vunpack.c.l.b16 %v364
    %v699 = vunpack.c.h.b16 %v364
    %v700 = vunpack.c.l.b16 %v365
    %v701 = vunpack.c.h.b16 %v365
    %v702 = vpack.c.b16 %v492, %v478
    %v703 = vpack.c.b16 %v493, %v479
    %v704 = vpack.c.b16 %v494, %v480
    %v705 = vpack.c.b16 %v495, %v481
    %v706 = vpack.c.b16 %v496, %v482
    %v707 = vpack.c.b16 %v497, %v483
    %v708 = vpack.c.b16 %v498, %v484
    %v709 = vpack.c.b16 %v499, %v485
    %v710 = vpack.c.b16 %v500, %v486
    %v711 = vpack.c.b16 %v501, %v487
    %v712 = vpack.c.b16 %v502, %v488
    %v713 = vpack.c.b16 %v503, %v489
    %v714 = vpack.c.b16 %v504, %v490
    %v715 = vpack.c.b16 %v505, %v491
    %v716 = vpack.c.b16 %v520, %v506
    %v717 = vpack.c.b16 %v521, %v507
    %v718 = vpack.c.b16 %v522, %v508
    %v719 = vpack.c.b16 %v523, %v509
    %v720 = vpack.c.b16 %v524, %v510
    %v721 = vpack.c.b16 %v525, %v511
    %v722 = vpack.c.b16 %v526, %v512
    %v723 = vpack.c.b16 %v527, %v513
    %v724 = vpack.c.b16 %v528, %v514
    %v725 = vpack.c.b16 %v529, %v515
    %v726 = vpack.c.b16 %v530, %v516
    %v727 = vpack.c.b16 %v531, %v517
    %v728 = vpack.c.b16 %v532, %v518
    %v729 = vpack.c.b16 %v533, %v519
    %v730 = vpack.c.b16 %v548, %v534
    %v731 = vpack.c.b16 %v549, %v535
    %v732 = vpack.c.b16 %v550, %v536
    %v733 = vpack.c.b16 %v551, %v537
    %v734 = vpack.c.b16 %v552, %v538
    %v735 = vpack.c.b16 %v553, %v539
    %v736 = vpack.c.b16 %v554, %v540
    %v737 = vpack.c.b16 %v555, %v541
    %v738 = vpack.c.b16 %v556, %v542
    %v739 = vpack.c.b16 %v557, %v543
    %v740 = vpack.c.b16 %v558, %v544
    %v741 = vpack.c.b16 %v559, %v545
    %v742 = vpack.c.b16 %v560, %v546
    %v743 = vpack.c.b16 %v561, %v547
    %v744 = vpack.c.b16 %v576, %v562
    %v745 = vpack.c.b16 %v577, %v563
    %v746 = vpack.c.b16 %v578, %v564
    %v747 = vpack.c.b16 %v579, %v565
    %v748 = vpack.c.b16 %v580, %v566
    %v749 = vpack.c.b16 %v581, %v567
    %v750 = vpack.c.b16 %v582, %v568
    %v751 = vpack.c.b16 %v583, %v569
    %v752 = vpack.c.b16 %v584, %v570
    %v753 = vpack.c.b16 %v585, %v571
    %v754 = vpack.c.b16 %v586, %v572
    %v755 = vpack.c.b16 %v587, %v573
    %v756 = vpack.c.b16 %v588, %v574
    %v757 = vpack.c.b16 %v589, %v575
    %v758 = vpack.c.b16 %v604, %v590
    %v759 = vpack.c.b16 %v605, %v591
    %v760 = vpack.c.b16 %v606, %v592
    %v761 = vpack.c.b16 %v607, %v593
    %v762 = vpack.c.b16 %v608, %v594
    %v763 = vpack.c.b16 %v609, %v595
    %v764 = vpack.c.b16 %v610, %v596
    %v765 = vpack.c.b16 %v611, %v597
    %v766 = vpack.c.b16 %v612, %v598
    %v767 = vpack.c.b16 %v613, %v599
    %v768 = vpack.c.b16 %v614, %v600
    %v769 = vpack.c.b16 %v615, %v601
    %v770 = vpack.c.b16 %v616, %v602
    %v771 = vpack.c.b16 %v617, %v603
    %v772 = vpack.c.b16 %v632, %v618
    %v773 = vpack.c.b16 %v633, %v619
    %v774 = vpack.c.b16 %v634, %v620
    %v775 = vpack.c.b16 %v635, %v621
    %v776 = vpack.c.b16 %v636, %v622
    %v777 = vpack.c.b16 %v637, %v623
    %v778 = vpack.c.b16 %v638, %v624
    %v779 = vpack.c.b16 %v639, %v625
    %v780 = vpack.c.b16 %v640, %v626
    %v781 = vpack.c.b16 %v641, %v627
    %v782 = vpack.c.b16 %v642, %v628
    %v783 = vpack.c.b16 %v643, %v629
    %v784 = vpack.c.b16 %v644, %v630
    %v785 = vpack.c.b16 %v645, %v631
    %v786 = vpack.c.b16 %v660, %v646
    %v787 = vpack.c.b16 %v661, %v647
    %v788 = vpack.c.b16 %v662, %v648
    %v789 = vpack.c.b16 %v663, %v649
    %v790 = vpack.c.b16 %v664, %v650
    %v791 = vpack.c.b16 %v665, %v651
    %v792 = vpack.c.b16 %v666, %v652
    %v793 = vpack.c.b16 %v667, %v653
    %v794 = vpack.c.b16 %v668, %v654
    %v795 = vpack.c.b16 %v669, %v655
    %v796 = vpack.c.b16 %v670, %v656
    %v797 = vpack.c.b16 %v671, %v657
    %v798 = vpack.c.b16 %v672, %v658
    %v799 = vpack.c.b16 %v673, %v659
    %v800 = vpack.c.b16 %v688, %v674
    %v801 = vpack.c.b16 %v689, %v675
    %v802 = vpack.c.b16 %v690, %v676
    %v803 = vpack.c.b16 %v691, %v677
    %v804 = vpack.c.b16 %v692, %v678
    %v805 = vpack.c.b16 %v693, %v679
    %v806 = vpack.c.b16 %v694, %v680
    %v807 = vpack.c.b16 %v695, %v681
    %v808 = vpack.c.b16 %v696, %v682
    %v809 = vpack.c.b16 %v697, %v683
    %v810 = vpack.c.b16 %v698, %v684
    %v811 = vpack.c.b16 %v699, %v685
    %v812 = vpack.c.b16 %v700, %v686
    %v813 = vpack.c.b16 %v701, %v687
    %926 = vmatpush.bf16.msra.mxu0 %v800
    %927 = vmatpush.bf16.msra.mxu0 %v786
    %928 = vmatpush.bf16.msra.mxu0 %v772
    %929 = vmatpush.bf16.msra.mxu0 %v758
    %930 = vmatpush.bf16.msra.mxu0 %v744
    %931 = vmatpush.bf16.msra.mxu0 %v730
    %932 = vmatpush.bf16.msra.mxu0 %v716
    %933 = vmatpush.bf16.msra.mxu0 %v702
    %934 = vmatmul.bf16.gmra.mxu0 %v253
    %v935 = vpop.f32.mrf.mxu0
    %v936 = vadd.f32 0.0, %v935
    %v937 = vpop.f32.mrf.mxu0
    %v938 = vadd.f32 0.0, %v937
    %939 = vdwg.mxu0
    %940 = vmatpush.bf16.msra.mxu0 %v801
    %941 = vmatpush.bf16.msra.mxu0 %v787
    %942 = vmatpush.bf16.msra.mxu0 %v773
    %943 = vmatpush.bf16.msra.mxu0 %v759
    %944 = vmatpush.bf16.msra.mxu0 %v745
    %945 = vmatpush.bf16.msra.mxu0 %v731
    %946 = vmatpush.bf16.msra.mxu0 %v717
    %947 = vmatpush.bf16.msra.mxu0 %v703
    %948 = vmatmul.bf16.gmra.mxu0 %v253
    %v949 = vpop.f32.mrf.mxu0
    %v950 = vadd.f32 0.0, %v949
    %v951 = vpop.f32.mrf.mxu0
    %v952 = vadd.f32 0.0, %v951
    %953 = vdwg.mxu0
    %954 = vmatpush.bf16.msra.mxu0 %v802
    %955 = vmatpush.bf16.msra.mxu0 %v788
    %956 = vmatpush.bf16.msra.mxu0 %v774
    %957 = vmatpush.bf16.msra.mxu0 %v760
    %958 = vmatpush.bf16.msra.mxu0 %v746
    %959 = vmatpush.bf16.msra.mxu0 %v732
    %960 = vmatpush.bf16.msra.mxu0 %v718
    %961 = vmatpush.bf16.msra.mxu0 %v704
    %962 = vmatmul.bf16.gmra.mxu0 %v253
    %v963 = vpop.f32.mrf.mxu0
    %v964 = vadd.f32 0.0, %v963
    %v965 = vpop.f32.mrf.mxu0
    %v966 = vadd.f32 0.0, %v965
    %967 = vdwg.mxu0
    %968 = vmatpush.bf16.msra.mxu0 %v803
    %969 = vmatpush.bf16.msra.mxu0 %v789
    %970 = vmatpush.bf16.msra.mxu0 %v775
    %971 = vmatpush.bf16.msra.mxu0 %v761
    %972 = vmatpush.bf16.msra.mxu0 %v747
    %973 = vmatpush.bf16.msra.mxu0 %v733
    %974 = vmatpush.bf16.msra.mxu0 %v719
    %975 = vmatpush.bf16.msra.mxu0 %v705
    %976 = vmatmul.bf16.gmra.mxu0 %v253
    %v977 = vpop.f32.mrf.mxu0
    %v978 = vadd.f32 0.0, %v977
    %v979 = vpop.f32.mrf.mxu0
    %v980 = vadd.f32 0.0, %v979
    %981 = vdwg.mxu0
    %982 = vmatpush.bf16.msra.mxu0 %v804
    %983 = vmatpush.bf16.msra.mxu0 %v790
    %984 = vmatpush.bf16.msra.mxu0 %v776
    %985 = vmatpush.bf16.msra.mxu0 %v762
    %986 = vmatpush.bf16.msra.mxu0 %v748
    %987 = vmatpush.bf16.msra.mxu0 %v734
    %988 = vmatpush.bf16.msra.mxu0 %v720
    %989 = vmatpush.bf16.msra.mxu0 %v706
    %990 = vmatmul.bf16.gmra.mxu0 %v253
    %v991 = vpop.f32.mrf.mxu0
    %v992 = vadd.f32 0.0, %v991
    %v993 = vpop.f32.mrf.mxu0
    %v994 = vadd.f32 0.0, %v993
    %995 = vdwg.mxu0
    %996 = vmatpush.bf16.msra.mxu0 %v805
    %997 = vmatpush.bf16.msra.mxu0 %v791
    %998 = vmatpush.bf16.msra.mxu0 %v777
    %999 = vmatpush.bf16.msra.mxu0 %v763
    %1000 = vmatpush.bf16.msra.mxu0 %v749
    %1001 = vmatpush.bf16.msra.mxu0 %v735
    %1002 = vmatpush.bf16.msra.mxu0 %v721
    %1003 = vmatpush.bf16.msra.mxu0 %v707
    %1004 = vmatmul.bf16.gmra.mxu0 %v253
    %v1005 = vpop.f32.mrf.mxu0
    %v1006 = vadd.f32 0.0, %v1005
    %v1007 = vpop.f32.mrf.mxu0
    %v1008 = vadd.f32 0.0, %v1007
    %1009 = vdwg.mxu0
    %1010 = vmatpush.bf16.msra.mxu0 %v806
    %1011 = vmatpush.bf16.msra.mxu0 %v792
    %1012 = vmatpush.bf16.msra.mxu0 %v778
    %1013 = vmatpush.bf16.msra.mxu0 %v764
    %1014 = vmatpush.bf16.msra.mxu0 %v750
    %1015 = vmatpush.bf16.msra.mxu0 %v736
    %1016 = vmatpush.bf16.msra.mxu0 %v722
    %1017 = vmatpush.bf16.msra.mxu0 %v708
    %1018 = vmatmul.bf16.gmra.mxu0 %v253
    %v1019 = vpop.f32.mrf.mxu0
    %v1020 = vadd.f32 0.0, %v1019
    %v1021 = vpop.f32.mrf.mxu0
    %v1022 = vadd.f32 0.0, %v1021
    %1023 = vdwg.mxu0
    %1024 = vmatpush.bf16.msra.mxu0 %v807
    %1025 = vmatpush.bf16.msra.mxu0 %v793
    %1026 = vmatpush.bf16.msra.mxu0 %v779
    %1027 = vmatpush.bf16.msra.mxu0 %v765
    %1028 = vmatpush.bf16.msra.mxu0 %v751
    %1029 = vmatpush.bf16.msra.mxu0 %v737
    %1030 = vmatpush.bf16.msra.mxu0 %v723
    %1031 = vmatpush.bf16.msra.mxu0 %v709
    %1032 = vmatmul.bf16.gmra.mxu0 %v253
    %v1033 = vpop.f32.mrf.mxu0
    %v1034 = vadd.f32 0.0, %v1033
    %v1035 = vpop.f32.mrf.mxu0
    %v1036 = vadd.f32 0.0, %v1035
    %1037 = vdwg.mxu0
    %1038 = vmatpush.bf16.msra.mxu0 %v808
    %1039 = vmatpush.bf16.msra.mxu0 %v794
    %1040 = vmatpush.bf16.msra.mxu0 %v780
    %1041 = vmatpush.bf16.msra.mxu0 %v766
    %1042 = vmatpush.bf16.msra.mxu0 %v752
    %1043 = vmatpush.bf16.msra.mxu0 %v738
    %1044 = vmatpush.bf16.msra.mxu0 %v724
    %1045 = vmatpush.bf16.msra.mxu0 %v710
    %1046 = vmatmul.bf16.gmra.mxu0 %v253
    %v1047 = vpop.f32.mrf.mxu0
    %v1048 = vadd.f32 0.0, %v1047
    %v1049 = vpop.f32.mrf.mxu0
    %v1050 = vadd.f32 0.0, %v1049
    %1051 = vdwg.mxu0
    %1052 = vmatpush.bf16.msra.mxu0 %v809
    %1053 = vmatpush.bf16.msra.mxu0 %v795
    %1054 = vmatpush.bf16.msra.mxu0 %v781
    %1055 = vmatpush.bf16.msra.mxu0 %v767
    %1056 = vmatpush.bf16.msra.mxu0 %v753
    %1057 = vmatpush.bf16.msra.mxu0 %v739
    %1058 = vmatpush.bf16.msra.mxu0 %v725
    %1059 = vmatpush.bf16.msra.mxu0 %v711
    %1060 = vmatmul.bf16.gmra.mxu0 %v253
    %v1061 = vpop.f32.mrf.mxu0
    %v1062 = vadd.f32 0.0, %v1061
    %v1063 = vpop.f32.mrf.mxu0
    %v1064 = vadd.f32 0.0, %v1063
    %1065 = vdwg.mxu0
    %1066 = vmatpush.bf16.msra.mxu0 %v810
    %1067 = vmatpush.bf16.msra.mxu0 %v796
    %1068 = vmatpush.bf16.msra.mxu0 %v782
    %1069 = vmatpush.bf16.msra.mxu0 %v768
    %1070 = vmatpush.bf16.msra.mxu0 %v754
    %1071 = vmatpush.bf16.msra.mxu0 %v740
    %1072 = vmatpush.bf16.msra.mxu0 %v726
    %1073 = vmatpush.bf16.msra.mxu0 %v712
    %1074 = vmatmul.bf16.gmra.mxu0 %v253
    %v1075 = vpop.f32.mrf.mxu0
    %v1076 = vadd.f32 0.0, %v1075
    %v1077 = vpop.f32.mrf.mxu0
    %v1078 = vadd.f32 0.0, %v1077
    %1079 = vdwg.mxu0
    %1080 = vmatpush.bf16.msra.mxu0 %v811
    %1081 = vmatpush.bf16.msra.mxu0 %v797
    %1082 = vmatpush.bf16.msra.mxu0 %v783
    %1083 = vmatpush.bf16.msra.mxu0 %v769
    %1084 = vmatpush.bf16.msra.mxu0 %v755
    %1085 = vmatpush.bf16.msra.mxu0 %v741
    %1086 = vmatpush.bf16.msra.mxu0 %v727
    %1087 = vmatpush.bf16.msra.mxu0 %v713
    %1088 = vmatmul.bf16.gmra.mxu0 %v253
    %v1089 = vpop.f32.mrf.mxu0
    %v1090 = vadd.f32 0.0, %v1089
    %v1091 = vpop.f32.mrf.mxu0
    %v1092 = vadd.f32 0.0, %v1091
    %1093 = vdwg.mxu0
    %1094 = vmatpush.bf16.msra.mxu0 %v812
    %1095 = vmatpush.bf16.msra.mxu0 %v798
    %1096 = vmatpush.bf16.msra.mxu0 %v784
    %1097 = vmatpush.bf16.msra.mxu0 %v770
    %1098 = vmatpush.bf16.msra.mxu0 %v756
    %1099 = vmatpush.bf16.msra.mxu0 %v742
    %1100 = vmatpush.bf16.msra.mxu0 %v728
    %1101 = vmatpush.bf16.msra.mxu0 %v714
    %1102 = vmatmul.bf16.gmra.mxu0 %v253
    %v1103 = vpop.f32.mrf.mxu0
    %v1104 = vadd.f32 0.0, %v1103
    %v1105 = vpop.f32.mrf.mxu0
    %v1106 = vadd.f32 0.0, %v1105
    %1107 = vdwg.mxu0
    %1108 = vmatpush.bf16.msra.mxu0 %v813
    %1109 = vmatpush.bf16.msra.mxu0 %v799
    %1110 = vmatpush.bf16.msra.mxu0 %v785
    %1111 = vmatpush.bf16.msra.mxu0 %v771
    %1112 = vmatpush.bf16.msra.mxu0 %v757
    %1113 = vmatpush.bf16.msra.mxu0 %v743
    %1114 = vmatpush.bf16.msra.mxu0 %v729
    %1115 = vmatpush.bf16.msra.mxu0 %v715
    %1116 = vmatmul.bf16.gmra.mxu0 %v253
    %v1117 = vpop.f32.mrf.mxu0
    %v1118 = vadd.f32 0.0, %v1117
    %v1119 = vpop.f32.mrf.mxu0
    %v1120 = vadd.f32 0.0, %v1119
    %1121 = vdwg.mxu0
    %1124 = vrot.lane.b32.xlu0 %v179, 32
    %v1125 = vpop.permute.xlu0 %1124
    %1126 = vrot.lane.b32.xlu0 %v181, 32
    %v1127 = vpop.permute.xlu0 %1126
    %1130 = vrot.lane.b32.xlu0 %v179, 64
    %v1131 = vpop.permute.xlu0 %1130
    %1132 = vrot.lane.b32.xlu0 %v181, 64
    %v1133 = vpop.permute.xlu0 %1132
    %1136 = vrot.lane.b32.xlu0 %v179, 96
    %v1137 = vpop.permute.xlu0 %1136
    %1138 = vrot.lane.b32.xlu0 %v181, 96
    %v1139 = vpop.permute.xlu0 %1138
    %v1142 = vsel %vm165, %v179, %v1125
    %v1143 = vsel %vm165, %v181, %v1127
    %vm1144 = vcmask 523264
    %v1145 = vsel %vm1144, %v1142, %v1131
    %v1146 = vsel %vm1144, %v1143, %v1133
    %vm1147 = vcmask 785408
    %v1148 = vsel %vm1147, %v1145, %v1137
    %v1149 = vsel %vm1147, %v1146, %v1139
    %v1150 = vmul.f32 %v936, %v1148
    %v1151 = vmul.f32 %v938, %v1149
    %v1152 = vsel %vm165, %v1137, %v179
    %v1153 = vsel %vm165, %v1139, %v181
    %v1154 = vsel %vm1144, %v1152, %v1125
    %v1155 = vsel %vm1144, %v1153, %v1127
    %v1156 = vsel %vm1147, %v1154, %v1131
    %v1157 = vsel %vm1147, %v1155, %v1133
    %v1158 = vmul.f32 %v950, %v1156
    %v1159 = vmul.f32 %v952, %v1157
    %v1160 = vadd.f32 %v1150, %v1158
    %v1161 = vadd.f32 %v1151, %v1159
    %v1162 = vsel %vm165, %v1131, %v1137
    %v1163 = vsel %vm165, %v1133, %v1139
    %v1164 = vsel %vm1144, %v1162, %v179
    %v1165 = vsel %vm1144, %v1163, %v181
    %v1166 = vsel %vm1147, %v1164, %v1125
    %v1167 = vsel %vm1147, %v1165, %v1127
    %v1168 = vmul.f32 %v964, %v1166
    %v1169 = vmul.f32 %v966, %v1167
    %v1170 = vadd.f32 %v1160, %v1168
    %v1171 = vadd.f32 %v1161, %v1169
    %v1172 = vsel %vm165, %v1125, %v1131
    %v1173 = vsel %vm165, %v1127, %v1133
    %v1174 = vsel %vm1144, %v1172, %v1137
    %v1175 = vsel %vm1144, %v1173, %v1139
    %v1176 = vsel %vm1147, %v1174, %v179
    %v1177 = vsel %vm1147, %v1175, %v181
    %v1178 = vmul.f32 %v978, %v1176
    %v1179 = vmul.f32 %v980, %v1177
    %v1180 = vadd.f32 %v1170, %v1178
    %v1181 = vadd.f32 %v1171, %v1179
    %1184 = vrot.lane.b32.xlu0 %v193, 32
    %v1185 = vpop.permute.xlu0 %1184
    %1186 = vrot.lane.b32.xlu0 %v195, 32
    %v1187 = vpop.permute.xlu0 %1186
    %1190 = vrot.lane.b32.xlu0 %v193, 64
    %v1191 = vpop.permute.xlu0 %1190
    %1192 = vrot.lane.b32.xlu0 %v195, 64
    %v1193 = vpop.permute.xlu0 %1192
    %1196 = vrot.lane.b32.xlu0 %v193, 96
    %v1197 = vpop.permute.xlu0 %1196
    %1198 = vrot.lane.b32.xlu0 %v195, 96
    %v1199 = vpop.permute.xlu0 %1198
    %v1202 = vsel %vm165, %v193, %v1185
    %v1203 = vsel %vm165, %v195, %v1187
    %v1204 = vsel %vm1144, %v1202, %v1191
    %v1205 = vsel %vm1144, %v1203, %v1193
    %v1206 = vsel %vm1147, %v1204, %v1197
    %v1207 = vsel %vm1147, %v1205, %v1199
    %v1208 = vmul.f32 %v992, %v1206
    %v1209 = vmul.f32 %v994, %v1207
    %v1210 = vadd.f32 %v1180, %v1208
    %v1211 = vadd.f32 %v1181, %v1209
    %v1212 = vsel %vm165, %v1197, %v193
    %v1213 = vsel %vm165, %v1199, %v195
    %v1214 = vsel %vm1144, %v1212, %v1185
    %v1215 = vsel %vm1144, %v1213, %v1187
    %v1216 = vsel %vm1147, %v1214, %v1191
    %v1217 = vsel %vm1147, %v1215, %v1193
    %v1218 = vmul.f32 %v1006, %v1216
    %v1219 = vmul.f32 %v1008, %v1217
    %v1220 = vadd.f32 %v1210, %v1218
    %v1221 = vadd.f32 %v1211, %v1219
    %v1222 = vsel %vm165, %v1191, %v1197
    %v1223 = vsel %vm165, %v1193, %v1199
    %v1224 = vsel %vm1144, %v1222, %v193
    %v1225 = vsel %vm1144, %v1223, %v195
    %v1226 = vsel %vm1147, %v1224, %v1185
    %v1227 = vsel %vm1147, %v1225, %v1187
    %v1228 = vmul.f32 %v1020, %v1226
    %v1229 = vmul.f32 %v1022, %v1227
    %v1230 = vadd.f32 %v1220, %v1228
    %v1231 = vadd.f32 %v1221, %v1229
    %v1232 = vsel %vm165, %v1185, %v1191
    %v1233 = vsel %vm165, %v1187, %v1193
    %v1234 = vsel %vm1144, %v1232, %v1197
    %v1235 = vsel %vm1144, %v1233, %v1199
    %v1236 = vsel %vm1147, %v1234, %v193
    %v1237 = vsel %vm1147, %v1235, %v195
    %v1238 = vmul.f32 %v1034, %v1236
    %v1239 = vmul.f32 %v1036, %v1237
    %v1240 = vadd.f32 %v1230, %v1238
    %v1241 = vadd.f32 %v1231, %v1239
    %1244 = vrot.lane.b32.xlu0 %v207, 32
    %v1245 = vpop.permute.xlu0 %1244
    %1246 = vrot.lane.b32.xlu0 %v209, 32
    %v1247 = vpop.permute.xlu0 %1246
    %1250 = vrot.lane.b32.xlu0 %v207, 64
    %v1251 = vpop.permute.xlu0 %1250
    %1252 = vrot.lane.b32.xlu0 %v209, 64
    %v1253 = vpop.permute.xlu0 %1252
    %1256 = vrot.lane.b32.xlu0 %v207, 96
    %v1257 = vpop.permute.xlu0 %1256
    %1258 = vrot.lane.b32.xlu0 %v209, 96
    %v1259 = vpop.permute.xlu0 %1258
    %v1262 = vsel %vm165, %v207, %v1245
    %v1263 = vsel %vm165, %v209, %v1247
    %v1264 = vsel %vm1144, %v1262, %v1251
    %v1265 = vsel %vm1144, %v1263, %v1253
    %v1266 = vsel %vm1147, %v1264, %v1257
    %v1267 = vsel %vm1147, %v1265, %v1259
    %v1268 = vmul.f32 %v1048, %v1266
    %v1269 = vmul.f32 %v1050, %v1267
    %v1270 = vadd.f32 %v1240, %v1268
    %v1271 = vadd.f32 %v1241, %v1269
    %v1272 = vsel %vm165, %v1257, %v207
    %v1273 = vsel %vm165, %v1259, %v209
    %v1274 = vsel %vm1144, %v1272, %v1245
    %v1275 = vsel %vm1144, %v1273, %v1247
    %v1276 = vsel %vm1147, %v1274, %v1251
    %v1277 = vsel %vm1147, %v1275, %v1253
    %v1278 = vmul.f32 %v1062, %v1276
    %v1279 = vmul.f32 %v1064, %v1277
    %v1280 = vadd.f32 %v1270, %v1278
    %v1281 = vadd.f32 %v1271, %v1279
    %v1282 = vsel %vm165, %v1251, %v1257
    %v1283 = vsel %vm165, %v1253, %v1259
    %v1284 = vsel %vm1144, %v1282, %v207
    %v1285 = vsel %vm1144, %v1283, %v209
    %v1286 = vsel %vm1147, %v1284, %v1245
    %v1287 = vsel %vm1147, %v1285, %v1247
    %v1288 = vmul.f32 %v1076, %v1286
    %v1289 = vmul.f32 %v1078, %v1287
    %v1290 = vadd.f32 %v1280, %v1288
    %v1291 = vadd.f32 %v1281, %v1289
    %v1292 = vsel %vm165, %v1245, %v1251
    %v1293 = vsel %vm165, %v1247, %v1253
    %v1294 = vsel %vm1144, %v1292, %v1257
    %v1295 = vsel %vm1144, %v1293, %v1259
    %v1296 = vsel %vm1147, %v1294, %v207
    %v1297 = vsel %vm1147, %v1295, %v209
    %v1298 = vmul.f32 %v1090, %v1296
    %v1299 = vmul.f32 %v1092, %v1297
    %v1300 = vadd.f32 %v1290, %v1298
    %v1301 = vadd.f32 %v1291, %v1299
    %1304 = vrot.lane.b32.xlu0 %v221, 32
    %v1305 = vpop.permute.xlu0 %1304
    %1306 = vrot.lane.b32.xlu0 %v223, 32
    %v1307 = vpop.permute.xlu0 %1306
    %1310 = vrot.lane.b32.xlu0 %v221, 64
    %v1311 = vpop.permute.xlu0 %1310
    %1312 = vrot.lane.b32.xlu0 %v223, 64
    %v1313 = vpop.permute.xlu0 %1312
    %1316 = vrot.lane.b32.xlu0 %v221, 96
    %v1317 = vpop.permute.xlu0 %1316
    %1318 = vrot.lane.b32.xlu0 %v223, 96
    %v1319 = vpop.permute.xlu0 %1318
    %v1322 = vsel %vm165, %v221, %v1305
    %v1323 = vsel %vm165, %v223, %v1307
    %v1324 = vsel %vm1144, %v1322, %v1311
    %v1325 = vsel %vm1144, %v1323, %v1313
    %v1326 = vsel %vm1147, %v1324, %v1317
    %v1327 = vsel %vm1147, %v1325, %v1319
    %v1328 = vmul.f32 %v1104, %v1326
    %v1329 = vmul.f32 %v1106, %v1327
    %1332 = vrot.lane.b32.xlu0 %v235, 32
    %v1333 = vpop.permute.xlu0 %1332
    %1334 = vrot.lane.b32.xlu0 %v237, 32
    %v1335 = vpop.permute.xlu0 %1334
    %1338 = vrot.lane.b32.xlu0 %v235, 64
    %v1339 = vpop.permute.xlu0 %1338
    %1340 = vrot.lane.b32.xlu0 %v237, 64
    %v1341 = vpop.permute.xlu0 %1340
    %1344 = vrot.lane.b32.xlu0 %v235, 96
    %v1345 = vpop.permute.xlu0 %1344
    %1346 = vrot.lane.b32.xlu0 %v237, 96
    %v1347 = vpop.permute.xlu0 %1346
    %v1350 = vsel %vm165, %v235, %v1333
    %v1351 = vsel %vm165, %v237, %v1335
    %v1352 = vsel %vm1144, %v1350, %v1339
    %v1353 = vsel %vm1144, %v1351, %v1341
    %v1354 = vsel %vm1147, %v1352, %v1345
    %v1355 = vsel %vm1147, %v1353, %v1347
    %v1356 = vmul.f32 %v1118, %v1354
    %v1357 = vmul.f32 %v1120, %v1355
    %v1358 = vld [vmem:[#allocation8] sm:$0xff]
    %v1359 = vld [vmem:[#allocation8 + $0x18] sm:$0xff]
    %v1360 = vld [vmem:[#allocation8 + $0x8] sm:$0xff]
    %v1361 = vld [vmem:[#allocation8 + $0x20] sm:$0xff]
    %v1362 = vld [vmem:[#allocation8 + $0x10] sm:$0xff]
    %v1363 = vld [vmem:[#allocation8 + $0x28] sm:$0xff]
    %1364 = vrot.lane.b32.xlu0 %v1300, 16
    %v1365 = vpop.permute.xlu0 %1364
    %1366 = vrot.lane.b32.xlu0 %v1301, 16
    %v1367 = vpop.permute.xlu0 %1366
    %1368 = vrot.lane.b32.xlu0 %v1300, 112
    %v1369 = vpop.permute.xlu0 %1368
    %1370 = vrot.lane.b32.xlu0 %v1301, 112
    %v1371 = vpop.permute.xlu0 %1370
    %v1372 = vmul.f32 %v1300, %v1358
    %v1373 = vmul.f32 %v1301, %v1359
    %v1374 = vmul.f32 %v1365, %v1362
    %v1375 = vmul.f32 %v1367, %v1363
    %v1376 = vadd.f32 %v1372, %v1374
    %v1377 = vadd.f32 %v1373, %v1375
    %v1378 = vmul.f32 %v1369, %v1360
    %v1379 = vmul.f32 %v1371, %v1361
    %v1380 = vadd.f32 %v1376, %v1378
    %v1381 = vadd.f32 %v1377, %v1379
    %1382 = vst [vmem:[#allocation10] sm:$0xff] %v1380
    %1383 = vst [vmem:[#allocation10 + $0x8] sm:$0xff] %v1381
    %1384 = vrot.lane.b32.xlu0 %v1328, 16
    %v1385 = vpop.permute.xlu0 %1384
    %1386 = vrot.lane.b32.xlu0 %v1329, 16
    %v1387 = vpop.permute.xlu0 %1386
    %1388 = vrot.lane.b32.xlu0 %v1328, 112
    %v1389 = vpop.permute.xlu0 %1388
    %1390 = vrot.lane.b32.xlu0 %v1329, 112
    %v1391 = vpop.permute.xlu0 %1390
    %v1392 = vmul.f32 %v1328, %v1358
    %v1393 = vmul.f32 %v1329, %v1359
    %v1394 = vmul.f32 %v1385, %v1362
    %v1395 = vmul.f32 %v1387, %v1363
    %v1396 = vadd.f32 %v1392, %v1394
    %v1397 = vadd.f32 %v1393, %v1395
    %v1398 = vmul.f32 %v1389, %v1360
    %v1399 = vmul.f32 %v1391, %v1361
    %v1400 = vadd.f32 %v1396, %v1398
    %v1401 = vadd.f32 %v1397, %v1399
    %1402 = vst [vmem:[#allocation11] sm:$0xff] %v1400
    %1403 = vst [vmem:[#allocation11 + $0x8] sm:$0xff] %v1401
    %1404 = vst [vmem:[#allocation13] sm:$0xff] %v1356
    %1405 = vst [vmem:[#allocation13 + $0x8] sm:$0xff] %v1357
    // Predicated region
    $region34: #{tpu_custom_call.1} parent=1 // pred_check
      _
    $region35: #{tpu_custom_call.1} parent=1 // pred_check_branch
      %1407 = sbr.rel (0) target = $region37
    $region36: #{tpu_custom_call.1} parent=1 // pred_region
      %1409 = vsyncadd [#allocation4], 0
      %s1410 = sshll.u32 [#allocation10], 4
      %s1411 = int_to_ptr.vmem [resolvable:$true] %s1410
      %s1412 = sshll.u32 %s4, 4
      %s1413 = int_to_ptr.hbm [resolvable:$true] %s1412
      %1418 = dma.vmem_to_hbm [thread:$0]  %s1411, 256, %s1413, [#allocation4], 128, 128, 8
    $region37: #{tpu_custom_call.1} parent=1 // pred_fallthru
      _
    // Predicated region
    $region38: #{tpu_custom_call.1} parent=1 // pred_check
      _
    $region39: #{tpu_custom_call.1} parent=1 // pred_check_branch
      %1420 = sbr.rel (0) target = $region41
    $region40: #{tpu_custom_call.1} parent=1 // pred_region
      %1422 = vsyncadd [#allocation12], 0
      %s1423 = sshll.u32 [#allocation11], 4
      %s1424 = int_to_ptr.vmem [resolvable:$true] %s1423
      %s1425 = sshll.u32 %s5, 4
      %s1426 = int_to_ptr.hbm [resolvable:$true] %s1425
      %1431 = dma.vmem_to_hbm [thread:$0]  %s1424, 256, %s1426, [#allocation12], 128, 128, 8
    $region41: #{tpu_custom_call.1} parent=1 // pred_fallthru
      _
    // Predicated region
    $region42: #{tpu_custom_call.1} parent=1 // pred_check
      _
    $region43: #{tpu_custom_call.1} parent=1 // pred_check_branch
      %1433 = sbr.rel (0) target = $region45
    $region44: #{tpu_custom_call.1} parent=1 // pred_region
      %1435 = vsyncadd [#allocation12], 0
      %s1436 = sshll.u32 [#allocation13], 4
      %s1437 = int_to_ptr.vmem [resolvable:$true] %s1436
      %s1438 = sshll.u32 %s6, 4
      %s1439 = int_to_ptr.hbm [resolvable:$true] %s1438
      %1444 = dma.vmem_to_hbm [thread:$0]  %s1437, 256, %s1439, [#allocation12], 128, 128, 8
    $region45: #{tpu_custom_call.1} parent=1 // pred_fallthru
      _
    // Predicated region
    $region46: #{tpu_custom_call.1} parent=1 // pred_check
      _
    $region47: #{tpu_custom_call.1} parent=1 // pred_check_branch
      %1446 = sbr.rel (0) target = $region49
    $region48: #{tpu_custom_call.1} parent=1 // pred_region
      %1448 = dma.done [#allocation4], 256
    $region49: #{tpu_custom_call.1} parent=1 // pred_fallthru
      _
    // Predicated region
    $region50: #{tpu_custom_call.1} parent=1 // pred_check
      _
    $region51: #{tpu_custom_call.1} parent=1 // pred_check_branch
      %1450 = sbr.rel (0) target = $region53
    $region52: #{tpu_custom_call.1} parent=1 // pred_region
      %1452 = dma.done [#allocation12], 256
    $region53: #{tpu_custom_call.1} parent=1 // pred_fallthru
      _
    // Predicated region
    $region54: #{tpu_custom_call.1} parent=1 // pred_check
      _
    $region55: #{tpu_custom_call.1} parent=1 // pred_check_branch
      %1454 = sbr.rel (0) target = $region57
    $region56: #{tpu_custom_call.1} parent=1 // pred_region
      %1456 = dma.done [#allocation12], 256
    $region57: #{tpu_custom_call.1} parent=1 // pred_fallthru
      _
    %1457 = vsyncpa [#allocation3], 1
    %1458 = vsyncpa [#allocation6], 1
    %1459 = vsyncpa [#allocation9], 1
    %1460 = vsyncpa [#allocation4], 1
    %1461 = vsyncpa [#allocation12], 1

</llo_original>
